<compile_context>
chip_gen: v7x
topology: tpu7x:2x2x1
jax: 0.10.0
libtpu: 0.0.40
codegen_flags: <defaults>
</compile_context>

<pallas_src>
import functools

import jax
import jax.numpy as jnp
from jax import lax
from jax.experimental import pallas as pl
from jax.experimental.pallas import tpu as pltpu


def _round_up(v, m):
    return (v + m - 1) // m * m


def _swin_linear_kernel(x_ref, w_ref, b_ref, o_ref, acc_ref, *, inv_s, s_total, st, cw):
    """One (batch_tile, spatial_tile) grid step.

    x_ref : (bt, C, st)  VMEM tile of the flattened (B, C, S) feature map
    w_ref : (C, Op)      VMEM weights (Op = classes padded to a multiple of 128)
    b_ref : (1, Op)      VMEM f32 bias
    o_ref : (bt, Op)     VMEM f32 output block (written on the last spatial step only)
    acc_ref:(bt, C, cw)  VMEM f32 running per-lane-chunk spatial sum (scratch)
    """
    s = pl.program_id(1)
    n_s = pl.num_programs(1)
    n_chunks = st // cw                         # cw == 128, or cw == st when S < 128

    @pl.when(s == 0)
    def _init():
        acc_ref[...] = jnp.zeros_like(acc_ref)

    def _accumulate(valid):
        # `valid` (static int) = number of valid lanes in this spatial tile.
        # Pure VPU adds per step; no cross-lane (XLU) work until finalize.
        acc = acc_ref[...]
        for k in range(n_chunks):
            lo = k * cw
            if lo >= valid:                     # chunk entirely past the true spatial size
                break
            chunk = x_ref[:, :, lo:lo + cw].astype(jnp.float32)
            if lo + cw > valid:                 # chunk straddles S: mask tail lanes
                lane = lax.broadcasted_iota(jnp.int32, (1, 1, cw), 2)
                chunk = jnp.where(lane < (valid - lo), chunk, 0.0)
            acc = acc + chunk
        acc_ref[...] = acc

    rem = s_total % st
    if rem == 0:
        _accumulate(st)
    else:
        @pl.when(s != n_s - 1)
        def _full_tile():
            _accumulate(st)

        @pl.when(s == n_s - 1)
        def _ragged_tile():
            _accumulate(rem)

    @pl.when(s == n_s - 1)
    def _finalize():
        # Single cross-lane reduce + mean, then one MXU matmul + bias + EUP tanh.
        pooled = (jnp.sum(acc_ref[...], axis=-1) * inv_s).astype(w_ref.dtype)      # (bt, C)
        logits = jnp.dot(pooled, w_ref[...], preferred_element_type=jnp.float32)   # MXU
        o_ref[...] = jnp.tanh(logits + b_ref[...]).astype(o_ref.dtype)


def swin_linear(x, weight, bias):
    """SwinLinear forward for the last backbone feature.

    x:      (B, C, D, H, W)   (PyTorch layout of x[-1])
    weight: (C, O)            (transpose of nn.Linear.weight)
    bias:   (O,)
    returns (B, O) float32.
    """
    B, C, D, H, W = x.shape
    S = D * H * W
    O = weight.shape[1]

    x3 = x.reshape(B, C, S)                     # row-major merge of trailing dims: no copy

    # Lane-dense output: pad classes to a multiple of 128 (tiny arrays, cheap).
    o_pad = _round_up(O, 128)
    w_p = jnp.pad(weight, ((0, 0), (0, o_pad - O))) if o_pad != O else weight
    b_p = jnp.pad(bias.astype(jnp.float32), (0, o_pad - O)).reshape(1, o_pad)

    # ---- generation-aware VMEM budget --------------------------------------
    try:
        vmem_cap = int(pltpu.get_tpu_info().vmem_capacity_bytes)   # 128 MiB v5e/v6e, 64 MiB v7x
    except Exception:
        vmem_cap = 64 * 2 ** 20                                    # conservative (v7x)
    budget = int(vmem_cap * 0.70)                                  # headroom for Mosaic scratch

    x_item = x3.dtype.itemsize
    w_item = w_p.dtype.itemsize

    def vmem_need(bt_, st_, const_bufs):
        cw_ = 128 if st_ % 128 == 0 else st_
        return (2 * bt_ * C * st_ * x_item          # double-buffered x tile
                + const_bufs * C * o_pad * w_item   # weight
                + const_bufs * o_pad * 4            # bias
                + 2 * bt_ * o_pad * 4               # output block
                + bt_ * C * cw_ * 4)                # f32 accumulator

    # Batch tile: full batch if tiny (no (8,128) constraint on this dim of the x block, and the
    # (bt, Op) output block is then the full array); otherwise a multiple of 8.
    bt = B if B <= 8 else 8

    # Spatial tile: as large as the VMEM budget allows (long contiguous DMAs, few grid steps).
    # Ragged S is masked in-kernel, never padded in HBM.
    if S < 128:
        st = S                                   # single full (ragged) spatial tile
    else:
        st = min((S // 128) * 128, 2048)
        while st > 128 and vmem_need(bt, st, 2) > budget:
            st -= 128

    # Grow bt while VMEM allows and the "parallel" axis keeps >=2 steps (v7x megacore).
    if B > 8:
        while bt < 64 and bt * 4 <= B and vmem_need(bt * 2, st, 2) <= budget:
            bt *= 2

    cw = 128 if st % 128 == 0 else st
    grid = (pl.cdiv(B, bt), pl.cdiv(S, st))

    need = vmem_need(bt, st, 2)
    vmem_limit = int(min(max(need + (8 << 20), 32 << 20), vmem_cap - (8 << 20)))

    kernel = functools.partial(_swin_linear_kernel, inv_s=1.0 / S, s_total=S, st=st, cw=cw)

    def build(single_buffer_consts):
        if single_buffer_consts:
            w_spec = pl.BlockSpec((C, o_pad), lambda b, s: (0, 0), pipeline_mode=pl.Buffered(1))
            b_spec = pl.BlockSpec((1, o_pad), lambda b, s: (0, 0), pipeline_mode=pl.Buffered(1))
        else:
            w_spec = pl.BlockSpec((C, o_pad), lambda b, s: (0, 0))
            b_spec = pl.BlockSpec((1, o_pad), lambda b, s: (0, 0))
        return pl.pallas_call(
            kernel,
            out_shape=jax.ShapeDtypeStruct((B, o_pad), jnp.float32),
            grid_spec=pltpu.PrefetchScalarGridSpec(
                num_scalar_prefetch=0,
                grid=grid,
                in_specs=[
                    pl.BlockSpec((bt, C, st), lambda b, s: (b, 0, s)),   # streamed x tile
                    w_spec,                                              # resident weight
                    b_spec,                                              # resident bias
                ],
                out_specs=pl.BlockSpec((bt, o_pad), lambda b, s: (b, 0)),
                scratch_shapes=[pltpu.VMEM((bt, C, cw), jnp.float32)],
            ),
            compiler_params=pltpu.CompilerParams(
                dimension_semantics=("parallel", "arbitrary"),
                vmem_limit_bytes=vmem_limit,
            ),
        )

    try:
        out = build(True)(x3, w_p, b_p)
    except Exception:
        # Fallback if this JAX build does not accept pipeline_mode on pallas_call BlockSpecs.
        out = build(False)(x3, w_p, b_p)

    return out[:, :O]


def _reference(x, weight, bias):
    pooled = x.astype(jnp.float32).mean(axis=(2, 3, 4))   # AdaptiveAvgPool3d(1) + flatten
    return jnp.tanh(pooled @ weight.astype(jnp.float32) + bias.astype(jnp.float32))


if __name__ == "__main__":
    # Keep both the reference matmul and the in-kernel matmul at full f32 MXU precision so the
    # comparison tolerance only has to absorb summation-order / MXU-pass differences.
    jax.config.update("jax_default_matmul_precision", "highest")

    key = jax.random.PRNGKey(0)

    def run_case(case_key, B, C, D, H, W, O):
        k0, k1, k2, k3 = jax.random.split(case_key, 4)
        x_last = jax.random.normal(k0, (B, C, D, H, W), dtype=jnp.float32)
        bound = 1.0 / float(C) ** 0.5
        w = jax.random.uniform(k1, (C, O), minval=-bound, maxval=bound, dtype=jnp.float32)
        b = jax.random.uniform(k2, (O,), minval=-bound, maxval=bound, dtype=jnp.float32)
        # The module's forward receives a list of backbone features and uses only the last one.
        features = [jax.random.normal(k3, (B, max(C // 2, 1), D, H, W), dtype=jnp.float32), x_last]
        xin = features[-1]
        out = jax.block_until_ready(swin_linear(xin, w, b))
        ref = _reference(xin, w, b)
        assert out.shape == (B, O), (out.shape, (B, O))
        err = float(jnp.max(jnp.abs(out - ref)))
        assert jnp.allclose(out, ref, atol=5e-4, rtol=5e-4), f"max abs err {err}"

    keys = jax.random.split(key, 3)
    # lane-aligned spatial size, tiny batch
    run_case(keys[0], B=2, C=32, D=4, H=4, W=8, O=16)
    # ragged batch / spatial / classes (exercises the padding-free + masking paths)
    run_case(keys[1], B=3, C=48, D=3, H=5, W=7, O=10)
    # batch larger than the batch tile (ragged last batch block, >=2 parallel steps, ragged S tile)
    run_case(keys[2], B=18, C=64, D=2, H=9, W=9, O=5)

    print("KERNEL_OK")
</pallas_src>

<mosaic_0001>
module attributes {stable_mosaic.version = 11 : i64} {
  func.func @_swin_linear_kernel(%arg0: i32, %arg1: i32, %arg2: memref<2x32x128xf32, #tpu.memory_space<vmem>>, %arg3: memref<32x128xf32, #tpu.memory_space<vmem>>, %arg4: memref<1x128xf32, #tpu.memory_space<vmem>>, %arg5: memref<2x128xf32, #tpu.memory_space<vmem>>, %arg6: memref<2x32x128xf32, #tpu.memory_space<vmem>>) attributes {dimension_semantics = [#tpu.dimension_semantics<parallel>, #tpu.dimension_semantics<arbitrary>], iteration_bounds = array<i64: 1, 1>, scalar_prefetch = 0 : i64, scratch_operands = 1 : i64, tpu.core_type = #tpu.core_type<tc>, window_params = [{transform_indices = @transform_0, window_bounds = array<i64: 2, 32, 128>}, {pipeline_mode = #tpu.pipeline_mode<synchronous>, transform_indices = @transform_1, window_bounds = array<i64: 32, 128>}, {pipeline_mode = #tpu.pipeline_mode<synchronous>, transform_indices = @transform_2, window_bounds = array<i64: 1, 128>}, {transform_indices = @transform_3, window_bounds = array<i64: 2, 128>}]} {
    %c0_i32 = arith.constant 0 : i32
    %0 = arith.cmpi eq, %arg1, %c0_i32 : i32
    %1 = arith.extui %0 : i1 to i32
    %c0_i32_0 = arith.constant 0 : i32
    %2 = arith.cmpi ne, %1, %c0_i32_0 : i32
    scf.if %2 {
      %cst = arith.constant 0.000000e+00 : f32
      %10 = vector.broadcast %cst : f32 to vector<2x32x128xf32>
      %c0_11 = arith.constant 0 : index
      %c0_12 = arith.constant 0 : index
      %c0_13 = arith.constant 0 : index
      %11 = vector.load %arg6[%c0_11, %c0_12, %c0_13] : memref<2x32x128xf32, #tpu.memory_space<vmem>>, vector<2x32x128xf32>
      tpu.vector_store %arg6[%c0_11, %c0_12, %c0_13], %10 {strides = array<i32>} : memref<2x32x128xf32, #tpu.memory_space<vmem>>, vector<2x32x128xf32>,
    } else {
    }
    %c0 = arith.constant 0 : index
    %c0_1 = arith.constant 0 : index
    %c0_2 = arith.constant 0 : index
    %3 = vector.load %arg6[%c0, %c0_1, %c0_2] : memref<2x32x128xf32, #tpu.memory_space<vmem>>, vector<2x32x128xf32>
    %c0_3 = arith.constant 0 : index
    %c0_4 = arith.constant 0 : index
    %c0_5 = arith.constant 0 : index
    %4 = vector.load %arg2[%c0_3, %c0_4, %c0_5] : memref<2x32x128xf32, #tpu.memory_space<vmem>>, vector<2x32x128xf32>
    %5 = arith.addf %3, %4 : vector<2x32x128xf32>
    %c0_6 = arith.constant 0 : index
    %c0_7 = arith.constant 0 : index
    %c0_8 = arith.constant 0 : index
    %6 = vector.load %arg6[%c0_6, %c0_7, %c0_8] : memref<2x32x128xf32, #tpu.memory_space<vmem>>, vector<2x32x128xf32>
    tpu.vector_store %arg6[%c0_6, %c0_7, %c0_8], %5 {strides = array<i32>} : memref<2x32x128xf32, #tpu.memory_space<vmem>>, vector<2x32x128xf32>,
    %c0_i32_9 = arith.constant 0 : i32
    %7 = arith.cmpi eq, %arg1, %c0_i32_9 : i32
    %8 = arith.extui %7 : i1 to i32
    %c0_i32_10 = arith.constant 0 : i32
    %9 = arith.cmpi ne, %8, %c0_i32_10 : i32
    scf.if %9 {
      %c0_11 = arith.constant 0 : index
      %c0_12 = arith.constant 0 : index
      %c0_13 = arith.constant 0 : index
      %10 = vector.load %arg6[%c0_11, %c0_12, %c0_13] : memref<2x32x128xf32, #tpu.memory_space<vmem>>, vector<2x32x128xf32>
      %cst = arith.constant dense<0.000000e+00> : vector<2x32xf32>
      %11 = vector.multi_reduction <add>, %10, %cst [2] : vector<2x32x128xf32> to vector<2x32xf32>
      %cst_14 = arith.constant 7.812500e-03 : f32
      %12 = vector.broadcast %cst_14 : f32 to vector<2x32xf32>
      %13 = arith.mulf %11, %12 : vector<2x32xf32>
      %c0_15 = arith.constant 0 : index
      %c0_16 = arith.constant 0 : index
      %14 = vector.load %arg3[%c0_15, %c0_16] : memref<32x128xf32, #tpu.memory_space<vmem>>, vector<32x128xf32>
      %cst_17 = arith.constant dense<0.000000e+00> : vector<2x128xf32>
      %15 = tpu.matmul %13, %14, %cst_17 {dimension_numbers = #tpu.dot_dimension_numbers<[1], [0], [0], [1], [0, 0, 1, 1], [], []>, precision = #tpu.contract_precision<fp32>} : vector<2x32xf32>, vector<32x128xf32>, vector<2x128xf32> -> vector<2x128xf32>
      %c0_18 = arith.constant 0 : index
      %c0_19 = arith.constant 0 : index
      %16 = vector.load %arg4[%c0_18, %c0_19] : memref<1x128xf32, #tpu.memory_space<vmem>>, vector<1x128xf32>
      %17 = vector.broadcast %16 : vector<1x128xf32> to vector<2x128xf32>
      %18 = arith.addf %15, %17 : vector<2x128xf32>
      %19 = math.tanh %18 : vector<2x128xf32>
      %c0_20 = arith.constant 0 : index
      %c0_21 = arith.constant 0 : index
      %20 = vector.load %arg5[%c0_20, %c0_21] : memref<2x128xf32, #tpu.memory_space<vmem>>, vector<2x128xf32>
      tpu.vector_store %arg5[%c0_20, %c0_21], %19 {strides = array<i32>} : memref<2x128xf32, #tpu.memory_space<vmem>>, vector<2x128xf32>,
    } else {
    }
    return
  }
  func.func @transform_0(%arg0: i32, %arg1: i32) -> (i32, i32, i32) {
    %c0_i32 = arith.constant 0 : i32
    %c0_i32_0 = arith.constant 0 : i32
    return %arg0, %c0_i32, %arg1 : i32, i32, i32
  }
  func.func @transform_1(%arg0: i32, %arg1: i32) -> (i32, i32) {
    %c0_i32 = arith.constant 0 : i32
    %c0_i32_0 = arith.constant 0 : i32
    %c0_i32_1 = arith.constant 0 : i32
    return %c0_i32, %c0_i32_0 : i32, i32
  }
  func.func @transform_2(%arg0: i32, %arg1: i32) -> (i32, i32) {
    %c0_i32 = arith.constant 0 : i32
    %c0_i32_0 = arith.constant 0 : i32
    %c0_i32_1 = arith.constant 0 : i32
    return %c0_i32, %c0_i32_0 : i32, i32
  }
  func.func @transform_3(%arg0: i32, %arg1: i32) -> (i32, i32) {
    %c0_i32 = arith.constant 0 : i32
    %c0_i32_0 = arith.constant 0 : i32
    return %arg0, %c0_i32 : i32, i32
  }
}

module attributes {stable_mosaic.version = 11 : i64} {
  func.func @_swin_linear_kernel(%arg0: i32, %arg1: i32, %arg2: memref<2x32x128xf32, #tpu.memory_space<vmem>>, %arg3: memref<32x128xf32, #tpu.memory_space<vmem>>, %arg4: memref<1x128xf32, #tpu.memory_space<vmem>>, %arg5: memref<2x128xf32, #tpu.memory_space<vmem>>, %arg6: memref<2x32x128xf32, #tpu.memory_space<vmem>>) attributes {dimension_semantics = [#tpu.dimension_semantics<parallel>, #tpu.dimension_semantics<arbitrary>], iteration_bounds = array<i64: 1, 1>, scalar_prefetch = 0 : i64, scratch_operands = 1 : i64, tpu.core_type = #tpu.core_type<tc>, window_params = [{transform_indices = @transform_0, window_bounds = array<i64: 2, 32, 128>}, {pipeline_mode = #tpu.pipeline_mode<synchronous>, transform_indices = @transform_1, window_bounds = array<i64: 32, 128>}, {pipeline_mode = #tpu.pipeline_mode<synchronous>, transform_indices = @transform_2, window_bounds = array<i64: 1, 128>}, {transform_indices = @transform_3, window_bounds = array<i64: 2, 128>}]} {
    %c0_i32 = arith.constant 0 : i32
    %0 = arith.cmpi eq, %arg1, %c0_i32 : i32
    %1 = arith.extui %0 : i1 to i32
    %c0_i32_0 = arith.constant 0 : i32
    %2 = arith.cmpi ne, %1, %c0_i32_0 : i32
    scf.if %2 {
      %cst = arith.constant 0.000000e+00 : f32
      %10 = vector.broadcast %cst : f32 to vector<2x32x128xf32>
      %c0_11 = arith.constant 0 : index
      %c0_12 = arith.constant 0 : index
      %c0_13 = arith.constant 0 : index
      %11 = vector.load %arg6[%c0_11, %c0_12, %c0_13] : memref<2x32x128xf32, #tpu.memory_space<vmem>>, vector<2x32x128xf32>
      tpu.vector_store %arg6[%c0_11, %c0_12, %c0_13], %10 {strides = array<i32>} : memref<2x32x128xf32, #tpu.memory_space<vmem>>, vector<2x32x128xf32>,
    } else {
    }
    %c0 = arith.constant 0 : index
    %c0_1 = arith.constant 0 : index
    %c0_2 = arith.constant 0 : index
    %3 = vector.load %arg6[%c0, %c0_1, %c0_2] : memref<2x32x128xf32, #tpu.memory_space<vmem>>, vector<2x32x128xf32>
    %c0_3 = arith.constant 0 : index
    %c0_4 = arith.constant 0 : index
    %c0_5 = arith.constant 0 : index
    %4 = vector.load %arg2[%c0_3, %c0_4, %c0_5] : memref<2x32x128xf32, #tpu.memory_space<vmem>>, vector<2x32x128xf32>
    %5 = arith.addf %3, %4 : vector<2x32x128xf32>
    %c0_6 = arith.constant 0 : index
    %c0_7 = arith.constant 0 : index
    %c0_8 = arith.constant 0 : index
    %6 = vector.load %arg6[%c0_6, %c0_7, %c0_8] : memref<2x32x128xf32, #tpu.memory_space<vmem>>, vector<2x32x128xf32>
    tpu.vector_store %arg6[%c0_6, %c0_7, %c0_8], %5 {strides = array<i32>} : memref<2x32x128xf32, #tpu.memory_space<vmem>>, vector<2x32x128xf32>,
    %c0_i32_9 = arith.constant 0 : i32
    %7 = arith.cmpi eq, %arg1, %c0_i32_9 : i32
    %8 = arith.extui %7 : i1 to i32
    %c0_i32_10 = arith.constant 0 : i32
    %9 = arith.cmpi ne, %8, %c0_i32_10 : i32
    scf.if %9 {
      %c0_11 = arith.constant 0 : index
      %c0_12 = arith.constant 0 : index
      %c0_13 = arith.constant 0 : index
      %10 = vector.load %arg6[%c0_11, %c0_12, %c0_13] : memref<2x32x128xf32, #tpu.memory_space<vmem>>, vector<2x32x128xf32>
      %cst = arith.constant dense<0.000000e+00> : vector<2x32xf32>
      %11 = vector.multi_reduction <add>, %10, %cst [2] : vector<2x32x128xf32> to vector<2x32xf32>
      %cst_14 = arith.constant 7.812500e-03 : f32
      %12 = vector.broadcast %cst_14 : f32 to vector<2x32xf32>
      %13 = arith.mulf %11, %12 : vector<2x32xf32>
      %c0_15 = arith.constant 0 : index
      %c0_16 = arith.constant 0 : index
      %14 = vector.load %arg3[%c0_15, %c0_16] : memref<32x128xf32, #tpu.memory_space<vmem>>, vector<32x128xf32>
      %cst_17 = arith.constant dense<0.000000e+00> : vector<2x128xf32>
      %15 = tpu.matmul %13, %14, %cst_17 {dimension_numbers = #tpu.dot_dimension_numbers<[1], [0], [0], [1], [0, 0, 1, 1], [], []>, precision = #tpu.contract_precision<fp32>} : vector<2x32xf32>, vector<32x128xf32>, vector<2x128xf32> -> vector<2x128xf32>
      %c0_18 = arith.constant 0 : index
      %c0_19 = arith.constant 0 : index
      %16 = vector.load %arg4[%c0_18, %c0_19] : memref<1x128xf32, #tpu.memory_space<vmem>>, vector<1x128xf32>
      %17 = vector.broadcast %16 : vector<1x128xf32> to vector<2x128xf32>
      %18 = arith.addf %15, %17 : vector<2x128xf32>
      %19 = math.tanh %18 : vector<2x128xf32>
      %c0_20 = arith.constant 0 : index
      %c0_21 = arith.constant 0 : index
      %20 = vector.load %arg5[%c0_20, %c0_21] : memref<2x128xf32, #tpu.memory_space<vmem>>, vector<2x128xf32>
      tpu.vector_store %arg5[%c0_20, %c0_21], %19 {strides = array<i32>} : memref<2x128xf32, #tpu.memory_space<vmem>>, vector<2x128xf32>,
    } else {
    }
    return
  }
  func.func @transform_0(%arg0: i32, %arg1: i32) -> (i32, i32, i32) {
    %c0_i32 = arith.constant 0 : i32
    %c0_i32_0 = arith.constant 0 : i32
    return %arg0, %c0_i32, %arg1 : i32, i32, i32
  }
  func.func @transform_1(%arg0: i32, %arg1: i32) -> (i32, i32) {
    %c0_i32 = arith.constant 0 : i32
    %c0_i32_0 = arith.constant 0 : i32
    %c0_i32_1 = arith.constant 0 : i32
    return %c0_i32, %c0_i32_0 : i32, i32
  }
  func.func @transform_2(%arg0: i32, %arg1: i32) -> (i32, i32) {
    %c0_i32 = arith.constant 0 : i32
    %c0_i32_0 = arith.constant 0 : i32
    %c0_i32_1 = arith.constant 0 : i32
    return %c0_i32, %c0_i32_0 : i32, i32
  }
  func.func @transform_3(%arg0: i32, %arg1: i32) -> (i32, i32) {
    %c0_i32 = arith.constant 0 : i32
    %c0_i32_0 = arith.constant 0 : i32
    return %arg0, %c0_i32 : i32, i32
  }
}

</mosaic_0001>

<llo_original>
// kernel: tpu_custom_call.1
$region0: #{tpu_custom_call.1}
  #allocation0 [shape = 'u32[]', space=smem, size = 0x4, offset = 0x4, fixed_abs, tag = 'smem constant byte address 0x4 - core index']
  #allocation1 [shape = 'u32[144,128]{1,0:T(1,128)}', space=vmem, size = 0x12000, scoped, tag = 'internal scratch']
  #allocation2 [shape = 'f32[2,32,128]{2,1,0:T(8,128)}', space=vmem, size = 0x8000, scoped, tag = 'scratch operand']
  %s0 = inlined_call_operand.hbm [shape: f32[2,32,128], index: 0, kind: input, shape index: {}]
  %s1 = inlined_call_operand.hbm [shape: f32[32,128], index: 1, kind: input, shape index: {}]
  %s2 = inlined_call_operand.vmem [shape: f32[1,128], index: 2, kind: input, shape index: {}]
  %s3 = inlined_call_operand.hbm [shape: f32[2,128], index: 3, kind: output, shape index: {}]
  %s4 = sld [smem:[#allocation0]]
  $region38: #{tpu_custom_call.1} parent=0
    _
  %s6 = ssub.s32 1, %s4
  %s7 = scalar_select 0, %s6, %s4
  $region1: #{tpu_custom_call.1} parent=0
    #allocation3 [shape = 'u8[32768]{0}', space=vmem, size = 0x8000, scoped, tag = 'input window, operand 0, single buffered']
    #allocation4 [shape = 's32[1]{0}', space=sflag, size = 0x4, scoped, tag = 'scoped memory for tpu_custom_call.1']
    #allocation5 [shape = 's32[1]{0}', space=sflag, size = 0x4, scoped, tag = 'scoped memory for tpu_custom_call.1']
    #allocation6 [shape = 'u8[16384]{0}', space=vmem, size = 0x4000, scoped, tag = 'input window, operand 1, single buffered']
    #allocation7 [shape = 's32[1]{0}', space=sflag, size = 0x4, scoped, tag = 'scoped memory for tpu_custom_call.1']
    #allocation8 [shape = 'u8[1024]{0}', space=vmem, size = 0x400, scoped, tag = 'output window, operand 0, single buffered']
    %8 = vsyncpa [#allocation4], 0
    %9 = vsyncpa [#allocation7], 0
    %10 = vsyncpa [#allocation5], 0
    // Predicated region
    $region2: #{tpu_custom_call.1} parent=1 // pred_check
      _
    $region3: #{tpu_custom_call.1} parent=1 // pred_check_branch
      %12 = sbr.rel (0) target = $region5
    $region4: #{tpu_custom_call.1} parent=1 // pred_region
      %s14 = ssub.s32 1024, 1024
      %15 = vsyncadd [#allocation4], %s14
      %s16 = sshll.u32 [#allocation3], 4
      %s17 = int_to_ptr.vmem [resolvable:$true] %s16
      %22 = dma.hbm_to_vmem [thread:$0]  %s0, 1024, %s17, [#allocation4], 128, 128, 8
    $region5: #{tpu_custom_call.1} parent=1 // pred_fallthru
      _
    // Predicated region
    $region6: #{tpu_custom_call.1} parent=1 // pred_check
      _
    $region7: #{tpu_custom_call.1} parent=1 // pred_check_branch
      %24 = sbr.rel (0) target = $region9
    $region8: #{tpu_custom_call.1} parent=1 // pred_region
      %s26 = ssub.s32 512, 512
      %27 = vsyncadd [#allocation7], %s26
      %s28 = sshll.u32 [#allocation6], 4
      %s29 = int_to_ptr.vmem [resolvable:$true] %s28
      %34 = dma.hbm_to_vmem [thread:$0]  %s1, 512, %s29, [#allocation7], 128, 128, 8
    $region9: #{tpu_custom_call.1} parent=1 // pred_fallthru
      _
    // Predicated region
    $region10: #{tpu_custom_call.1} parent=1 // pred_check
      _
    $region11: #{tpu_custom_call.1} parent=1 // pred_check_branch
      %36 = sbr.rel (0) target = $region13
    $region12: #{tpu_custom_call.1} parent=1 // pred_region
      _
    $region13: #{tpu_custom_call.1} parent=1 // pred_fallthru
      _
    // Predicated region
    $region14: #{tpu_custom_call.1} parent=1 // pred_check
      _
    $region15: #{tpu_custom_call.1} parent=1 // pred_check_branch
      %38 = sbr.rel (0) target = $region17
    $region16: #{tpu_custom_call.1} parent=1 // pred_region
      %39 = dma.done [#allocation4], 1024
    $region17: #{tpu_custom_call.1} parent=1 // pred_fallthru
      _
    // Predicated region
    $region18: #{tpu_custom_call.1} parent=1 // pred_check
      _
    $region19: #{tpu_custom_call.1} parent=1 // pred_check_branch
      %41 = sbr.rel (0) target = $region21
    $region20: #{tpu_custom_call.1} parent=1 // pred_region
      %42 = dma.done [#allocation7], 512
    $region21: #{tpu_custom_call.1} parent=1 // pred_fallthru
      _
    %p43 = scmp.eq.s32.totalorder 0, 0
    // Predicated region
    $region22: #{tpu_custom_call.1} parent=1 // pred_check
      %p44 = pneg %p43
    $region23: #{tpu_custom_call.1} parent=1 // pred_check_branch
      %46 = sbr.rel (%p44) target = $region25
    $region24: #{tpu_custom_call.1} parent=1 // pred_region
      %47 = vst [vmem:[#allocation2] sm:$0xff] 0.0
      %48 = vst [vmem:[#allocation2 + $0x8] sm:$0xff] 0.0
      %49 = vst [vmem:[#allocation2 + $0x10] sm:$0xff] 0.0
      %50 = vst [vmem:[#allocation2 + $0x18] sm:$0xff] 0.0
      %51 = vst [vmem:[#allocation2 + $0x20] sm:$0xff] 0.0
      %52 = vst [vmem:[#allocation2 + $0x28] sm:$0xff] 0.0
      %53 = vst [vmem:[#allocation2 + $0x30] sm:$0xff] 0.0
      %54 = vst [vmem:[#allocation2 + $0x38] sm:$0xff] 0.0
    $region25: #{tpu_custom_call.1} parent=1 // pred_fallthru
      _
    %v55 = vld [vmem:[#allocation2] sm:$0xff]
    %v56 = vld [vmem:[#allocation2 + $0x8] sm:$0xff]
    %v57 = vld [vmem:[#allocation2 + $0x10] sm:$0xff]
    %v58 = vld [vmem:[#allocation2 + $0x18] sm:$0xff]
    %v59 = vld [vmem:[#allocation2 + $0x20] sm:$0xff]
    %v60 = vld [vmem:[#allocation2 + $0x28] sm:$0xff]
    %v61 = vld [vmem:[#allocation2 + $0x30] sm:$0xff]
    %v62 = vld [vmem:[#allocation2 + $0x38] sm:$0xff]
    %v63 = vld [vmem:[#allocation3] sm:$0xff]
    %v64 = vld [vmem:[#allocation3 + $0x8] sm:$0xff]
    %v65 = vld [vmem:[#allocation3 + $0x10] sm:$0xff]
    %v66 = vld [vmem:[#allocation3 + $0x18] sm:$0xff]
    %v67 = vld [vmem:[#allocation3 + $0x20] sm:$0xff]
    %v68 = vld [vmem:[#allocation3 + $0x28] sm:$0xff]
    %v69 = vld [vmem:[#allocation3 + $0x30] sm:$0xff]
    %v70 = vld [vmem:[#allocation3 + $0x38] sm:$0xff]
    %v71 = vadd.f32 %v55, %v63
    %v72 = vadd.f32 %v56, %v64
    %v73 = vadd.f32 %v57, %v65
    %v74 = vadd.f32 %v58, %v66
    %v75 = vadd.f32 %v59, %v67
    %v76 = vadd.f32 %v60, %v68
    %v77 = vadd.f32 %v61, %v69
    %v78 = vadd.f32 %v62, %v70
    %79 = vst [vmem:[#allocation2] sm:$0xff] %v71
    %80 = vst [vmem:[#allocation2 + $0x8] sm:$0xff] %v72
    %81 = vst [vmem:[#allocation2 + $0x10] sm:$0xff] %v73
    %82 = vst [vmem:[#allocation2 + $0x18] sm:$0xff] %v74
    %83 = vst [vmem:[#allocation2 + $0x20] sm:$0xff] %v75
    %84 = vst [vmem:[#allocation2 + $0x28] sm:$0xff] %v76
    %85 = vst [vmem:[#allocation2 + $0x30] sm:$0xff] %v77
    %86 = vst [vmem:[#allocation2 + $0x38] sm:$0xff] %v78
    // Predicated region
    $region26: #{tpu_custom_call.1} parent=1 // pred_check
      %p87 = pneg %p43
    $region27: #{tpu_custom_call.1} parent=1 // pred_check_branch
      %89 = sbr.rel (%p87) target = $region29
    $region28: #{tpu_custom_call.1} parent=1 // pred_region
      %v90 = vld [vmem:[#allocation2] sm:$0xff]
      %v91 = vld [vmem:[#allocation2 + $0x8] sm:$0xff]
      %v92 = vld [vmem:[#allocation2 + $0x10] sm:$0xff]
      %v93 = vld [vmem:[#allocation2 + $0x18] sm:$0xff]
      %v94 = vld [vmem:[#allocation2 + $0x20] sm:$0xff]
      %v95 = vld [vmem:[#allocation2 + $0x28] sm:$0xff]
      %v96 = vld [vmem:[#allocation2 + $0x30] sm:$0xff]
      %v97 = vld [vmem:[#allocation2 + $0x38] sm:$0xff]
      %98 = vadd.xlane.f32.xlu0 %v90
      %v99 = vpop.xlane.xlu0 %98
      %100 = vadd.xlane.f32.xlu0 %v91
      %v101 = vpop.xlane.xlu0 %100
      %102 = vadd.xlane.f32.xlu0 %v92
      %v103 = vpop.xlane.xlu0 %102
      %104 = vadd.xlane.f32.xlu0 %v93
      %v105 = vpop.xlane.xlu0 %104
      %106 = vadd.xlane.f32.xlu0 %v94
      %v107 = vpop.xlane.xlu0 %106
      %108 = vadd.xlane.f32.xlu0 %v95
      %v109 = vpop.xlane.xlu0 %108
      %110 = vadd.xlane.f32.xlu0 %v96
      %v111 = vpop.xlane.xlu0 %110
      %112 = vadd.xlane.f32.xlu0 %v97
      %v113 = vpop.xlane.xlu0 %112
      %v114 = vmul.f32 %v99, 0.0078125
      %v115 = vmul.f32 %v101, 0.0078125
      %v116 = vmul.f32 %v103, 0.0078125
      %v117 = vmul.f32 %v105, 0.0078125
      %v118 = vmul.f32 %v107, 0.0078125
      %v119 = vmul.f32 %v109, 0.0078125
      %v120 = vmul.f32 %v111, 0.0078125
      %v121 = vmul.f32 %v113, 0.0078125
      %v122 = vld [vmem:[#allocation6] sm:$0xff]
      %v123 = vld [vmem:[#allocation6 + $0x8] sm:$0xff]
      %v124 = vld [vmem:[#allocation6 + $0x10] sm:$0xff]
      %v125 = vld [vmem:[#allocation6 + $0x18] sm:$0xff]
      %v126 = vld [vmem:[%s2] sm:$0x1]
      %v128 = vlaneseq
      %v129 = vshrl.u32 %v128, 7
      %v130 = vsub.s32 0, %v129
      %v131 = vrot.slane %v126, %v130
      %v141 = vlaneseq
      %v142 = vand.u32 %v141, 127
      %v143 = vlaneseq
      %v144 = vshrl.u32 %v143, 7
      %v145 = vsub.s32 %v142, %v144
      %v146 = vrot.slane %v114, %v145
      %v147 = vadd.s32 %v142, 4294967288
      %v148 = vlaneseq
      %v149 = vshrl.u32 %v148, 7
      %v150 = vsub.s32 %v147, %v149
      %v151 = vrot.slane %v115, %v150
      %vm152 = vcmask 130112
      %v153 = vsel %vm152, %v151, %v146
      %v154 = vadd.s32 %v142, 4294967280
      %v155 = vlaneseq
      %v156 = vshrl.u32 %v155, 7
      %v157 = vsub.s32 %v154, %v156
      %v158 = vrot.slane %v116, %v157
      %vm159 = vcmask 195712
      %v160 = vsel %vm159, %v158, %v153
      %v161 = vadd.s32 %v142, 4294967272
      %v162 = vlaneseq
      %v163 = vshrl.u32 %v162, 7
      %v164 = vsub.s32 %v161, %v163
      %v165 = vrot.slane %v117, %v164
      %vm166 = vcmask 261312
      %v167 = vsel %vm166, %v165, %v160
      %v168 = vlaneseq
      %v169 = vshrl.u32 %v168, 7
      %v170 = vsub.s32 %v142, %v169
      %v171 = vrot.slane %v118, %v170
      %v172 = vlaneseq
      %v173 = vshrl.u32 %v172, 7
      %v174 = vsub.s32 %v147, %v173
      %v175 = vrot.slane %v119, %v174
      %v176 = vsel %vm152, %v175, %v171
      %v177 = vlaneseq
      %v178 = vshrl.u32 %v177, 7
      %v179 = vsub.s32 %v154, %v178
      %v180 = vrot.slane %v120, %v179
      %v181 = vsel %vm159, %v180, %v176
      %v182 = vlaneseq
      %v183 = vshrl.u32 %v182, 7
      %v184 = vsub.s32 %v161, %v183
      %v185 = vrot.slane %v121, %v184
      %v186 = vsel %vm166, %v185, %v181
      %vm187 = vcmask 1041409
      %v188 = vsel %vm187, %v186, %v167
      %vm189 = vcmask 261120
      %v190 = vsel %vm189, %v188, 0
      %192 = vmatprep.subr.mxu0 0.0
      %v193 = vand.u32 %v122, 4294901760
      %194 = vmatpush1.msra.mxu0 %v193
      %195 = vmatprep.subr.mxu0 0.0
      %v196 = vand.u32 %v123, 4294901760
      %197 = vmatpush1.msra.mxu0 %v196
      %198 = vmatprep.subr.mxu0 0.0
      %v199 = vand.u32 %v124, 4294901760
      %200 = vmatpush1.msra.mxu0 %v199
      %201 = vmatprep.subr.mxu0 0.0
      %v202 = vand.u32 %v125, 4294901760
      %203 = vmatpush1.msra.mxu0 %v202
      %204 = vmatprep.subr.mxu0 0.0
      %205 = vmatpush1.msra.mxu0 0.0
      %206 = vmatprep.subr.mxu0 0.0
      %207 = vmatpush1.msra.mxu0 0.0
      %208 = vmatprep.subr.mxu0 0.0
      %209 = vmatpush1.msra.mxu0 0.0
      %210 = vmatprep.subr.mxu0 0.0
      %211 = vmatpush1.msra.mxu0 0.0
      %212 = vmatprep.subr.mxu0 0.0
      %213 = vmatpush1.msra.mxu0 0.0
      %214 = vmatprep.subr.mxu0 0.0
      %215 = vmatpush1.msra.mxu0 0.0
      %216 = vmatprep.subr.mxu0 0.0
      %217 = vmatpush1.msra.mxu0 0.0
      %218 = vmatprep.subr.mxu0 0.0
      %219 = vmatpush1.msra.mxu0 0.0
      %220 = vmatprep.subr.mxu0 0.0
      %221 = vmatpush1.msra.mxu0 0.0
      %222 = vmatprep.subr.mxu0 0.0
      %223 = vmatpush1.msra.mxu0 0.0
      %224 = vmatprep.subr.mxu0 0.0
      %225 = vmatpush1.msra.mxu0 0.0
      %226 = vmatprep.subr.mxu0 0.0
      %227 = vmatpush1.msra.mxu0 0.0
      %228 = vmatprep.subr.mxu0 0.0
      %229 = vmatpush1.msra.mxu0 0.0
      %230 = vmatprep.subr.mxu0 0.0
      %231 = vmatpush1.msra.mxu0 0.0
      %232 = vmatprep.subr.mxu0 0.0
      %233 = vmatpush1.msra.mxu0 0.0
      %234 = vmatprep.subr.mxu0 0.0
      %235 = vmatpush1.msra.mxu0 0.0
      %236 = vmatprep.subr.mxu0 0.0
      %237 = vmatpush1.msra.mxu0 0.0
      %238 = vmatprep.subr.mxu0 0.0
      %239 = vmatpush1.msra.mxu0 0.0
      %240 = vmatprep.subr.mxu0 0.0
      %241 = vmatpush1.msra.mxu0 0.0
      %242 = vmatprep.subr.mxu0 0.0
      %243 = vmatpush1.msra.mxu0 0.0
      %244 = vmatprep.subr.mxu0 0.0
      %245 = vmatpush1.msra.mxu0 0.0
      %246 = vmatprep.subr.mxu0 0.0
      %247 = vmatpush1.msra.mxu0 0.0
      %248 = vmatprep.subr.mxu0 0.0
      %249 = vmatpush1.msra.mxu0 0.0
      %250 = vmatprep.subr.mxu0 0.0
      %251 = vmatpush1.msra.mxu0 0.0
      %252 = vmatprep.subr.mxu0 0.0
      %253 = vmatpush1.msra.mxu0 0.0
      %254 = vmatprep.subr.mxu0 0.0
      %255 = vmatpush1.msra.mxu0 0.0
      %256 = vmatprep.subr.mxu0 0.0
      %257 = vmatpush1.msra.mxu0 0.0
      %258 = vmatprep.subr.mxu0 0.0
      %259 = vmatpush1.msra.mxu0 0.0
      %260 = vmatprep.mubr.f32.mxu0 0.0
      %v261 = vand.u32 %v190, 4294901760
      %v262 = vsub.f32 %v190, %v261
      %v263 = vand.u32 %v262, 4294901760
      %v264 = vsub.f32 %v262, %v263
      %v265 = vand.u32 %v264, 4294901760
      %266 = vmatmul.mubr.f32.gmra.mrb[0].mxu0 %v265
      %v267 = vpop.f32.mrb[0].mxu0
      %v268 = vadd.f32 %v131, %v267
      %v269 = vpop.f32.mrb[0].mxu0
      %270 = vdwg.mxu0
      %271 = vmatprep.subr.mxu0 0.0
      %v272 = vand.u32 %v122, 4294901760
      %v273 = vsub.f32 %v122, %v272
      %v274 = vand.u32 %v273, 4294901760
      %v275 = vsub.f32 %v273, %v274
      %v276 = vand.u32 %v275, 4294901760
      %277 = vmatpush1.msra.mxu0 %v276
      %278 = vmatprep.subr.mxu0 0.0
      %v279 = vand.u32 %v123, 4294901760
      %v280 = vsub.f32 %v123, %v279
      %v281 = vand.u32 %v280, 4294901760
      %v282 = vsub.f32 %v280, %v281
      %v283 = vand.u32 %v282, 4294901760
      %284 = vmatpush1.msra.mxu0 %v283
      %285 = vmatprep.subr.mxu0 0.0
      %v286 = vand.u32 %v124, 4294901760
      %v287 = vsub.f32 %v124, %v286
      %v288 = vand.u32 %v287, 4294901760
      %v289 = vsub.f32 %v287, %v288
      %v290 = vand.u32 %v289, 4294901760
      %291 = vmatpush1.msra.mxu0 %v290
      %292 = vmatprep.subr.mxu0 0.0
      %v293 = vand.u32 %v125, 4294901760
      %v294 = vsub.f32 %v125, %v293
      %v295 = vand.u32 %v294, 4294901760
      %v296 = vsub.f32 %v294, %v295
      %v297 = vand.u32 %v296, 4294901760
      %298 = vmatpush1.msra.mxu0 %v297
      %299 = vmatprep.subr.mxu0 0.0
      %300 = vmatpush1.msra.mxu0 0.0
      %301 = vmatprep.subr.mxu0 0.0
      %302 = vmatpush1.msra.mxu0 0.0
      %303 = vmatprep.subr.mxu0 0.0
      %304 = vmatpush1.msra.mxu0 0.0
      %305 = vmatprep.subr.mxu0 0.0
      %306 = vmatpush1.msra.mxu0 0.0
      %307 = vmatprep.subr.mxu0 0.0
      %308 = vmatpush1.msra.mxu0 0.0
      %309 = vmatprep.subr.mxu0 0.0
      %310 = vmatpush1.msra.mxu0 0.0
      %311 = vmatprep.subr.mxu0 0.0
      %312 = vmatpush1.msra.mxu0 0.0
      %313 = vmatprep.subr.mxu0 0.0
      %314 = vmatpush1.msra.mxu0 0.0
      %315 = vmatprep.subr.mxu0 0.0
      %316 = vmatpush1.msra.mxu0 0.0
      %317 = vmatprep.subr.mxu0 0.0
      %318 = vmatpush1.msra.mxu0 0.0
      %319 = vmatprep.subr.mxu0 0.0
      %320 = vmatpush1.msra.mxu0 0.0
      %321 = vmatprep.subr.mxu0 0.0
      %322 = vmatpush1.msra.mxu0 0.0
      %323 = vmatprep.subr.mxu0 0.0
      %324 = vmatpush1.msra.mxu0 0.0
      %325 = vmatprep.subr.mxu0 0.0
      %326 = vmatpush1.msra.mxu0 0.0
      %327 = vmatprep.subr.mxu0 0.0
      %328 = vmatpush1.msra.mxu0 0.0
      %329 = vmatprep.subr.mxu0 0.0
      %330 = vmatpush1.msra.mxu0 0.0
      %331 = vmatprep.subr.mxu0 0.0
      %332 = vmatpush1.msra.mxu0 0.0
      %333 = vmatprep.subr.mxu0 0.0
      %334 = vmatpush1.msra.mxu0 0.0
      %335 = vmatprep.subr.mxu0 0.0
      %336 = vmatpush1.msra.mxu0 0.0
      %337 = vmatprep.subr.mxu0 0.0
      %338 = vmatpush1.msra.mxu0 0.0
      %339 = vmatprep.subr.mxu0 0.0
      %340 = vmatpush1.msra.mxu0 0.0
      %341 = vmatprep.subr.mxu0 0.0
      %342 = vmatpush1.msra.mxu0 0.0
      %343 = vmatprep.subr.mxu0 0.0
      %344 = vmatpush1.msra.mxu0 0.0
      %345 = vmatprep.subr.mxu0 0.0
      %346 = vmatpush1.msra.mxu0 0.0
      %347 = vmatprep.subr.mxu0 0.0
      %348 = vmatpush1.msra.mxu0 0.0
      %349 = vmatprep.subr.mxu0 0.0
      %350 = vmatpush1.msra.mxu0 0.0
      %351 = vmatprep.subr.mxu0 0.0
      %352 = vmatpush1.msra.mxu0 0.0
      %353 = vmatprep.subr.mxu0 0.0
      %354 = vmatpush1.msra.mxu0 0.0
      %355 = vmatprep.mubr.f32.mxu0 0.0
      %v356 = vand.u32 %v190, 4294901760
      %357 = vmatmul.mubr.f32.gmra.mrb[0].mxu0 %v356
      %v358 = vpop.f32.mrb[0].mxu0
      %v359 = vadd.f32 %v268, %v358
      %v360 = vpop.f32.mrb[0].mxu0
      %361 = vdwg.mxu0
      %362 = vmatprep.subr.mxu0 0.0
      %v363 = vand.u32 %v122, 4294901760
      %v364 = vsub.f32 %v122, %v363
      %365 = vmatpush1.msra.mxu0 %v364
      %366 = vmatprep.subr.mxu0 0.0
      %v367 = vand.u32 %v123, 4294901760
      %v368 = vsub.f32 %v123, %v367
      %369 = vmatpush1.msra.mxu0 %v368
      %370 = vmatprep.subr.mxu0 0.0
      %v371 = vand.u32 %v124, 4294901760
      %v372 = vsub.f32 %v124, %v371
      %373 = vmatpush1.msra.mxu0 %v372
      %374 = vmatprep.subr.mxu0 0.0
      %v375 = vand.u32 %v125, 4294901760
      %v376 = vsub.f32 %v125, %v375
      %377 = vmatpush1.msra.mxu0 %v376
      %378 = vmatprep.subr.mxu0 0.0
      %379 = vmatpush1.msra.mxu0 0.0
      %380 = vmatprep.subr.mxu0 0.0
      %381 = vmatpush1.msra.mxu0 0.0
      %382 = vmatprep.subr.mxu0 0.0
      %383 = vmatpush1.msra.mxu0 0.0
      %384 = vmatprep.subr.mxu0 0.0
      %385 = vmatpush1.msra.mxu0 0.0
      %386 = vmatprep.subr.mxu0 0.0
      %387 = vmatpush1.msra.mxu0 0.0
      %388 = vmatprep.subr.mxu0 0.0
      %389 = vmatpush1.msra.mxu0 0.0
      %390 = vmatprep.subr.mxu0 0.0
      %391 = vmatpush1.msra.mxu0 0.0
      %392 = vmatprep.subr.mxu0 0.0
      %393 = vmatpush1.msra.mxu0 0.0
      %394 = vmatprep.subr.mxu0 0.0
      %395 = vmatpush1.msra.mxu0 0.0
      %396 = vmatprep.subr.mxu0 0.0
      %397 = vmatpush1.msra.mxu0 0.0
      %398 = vmatprep.subr.mxu0 0.0
      %399 = vmatpush1.msra.mxu0 0.0
      %400 = vmatprep.subr.mxu0 0.0
      %401 = vmatpush1.msra.mxu0 0.0
      %402 = vmatprep.subr.mxu0 0.0
      %403 = vmatpush1.msra.mxu0 0.0
      %404 = vmatprep.subr.mxu0 0.0
      %405 = vmatpush1.msra.mxu0 0.0
      %406 = vmatprep.subr.mxu0 0.0
      %407 = vmatpush1.msra.mxu0 0.0
      %408 = vmatprep.subr.mxu0 0.0
      %409 = vmatpush1.msra.mxu0 0.0
      %410 = vmatprep.subr.mxu0 0.0
      %411 = vmatpush1.msra.mxu0 0.0
      %412 = vmatprep.subr.mxu0 0.0
      %413 = vmatpush1.msra.mxu0 0.0
      %414 = vmatprep.subr.mxu0 0.0
      %415 = vmatpush1.msra.mxu0 0.0
      %416 = vmatprep.subr.mxu0 0.0
      %417 = vmatpush1.msra.mxu0 0.0
      %418 = vmatprep.subr.mxu0 0.0
      %419 = vmatpush1.msra.mxu0 0.0
      %420 = vmatprep.subr.mxu0 0.0
      %421 = vmatpush1.msra.mxu0 0.0
      %422 = vmatprep.subr.mxu0 0.0
      %423 = vmatpush1.msra.mxu0 0.0
      %424 = vmatprep.subr.mxu0 0.0
      %425 = vmatpush1.msra.mxu0 0.0
      %426 = vmatprep.subr.mxu0 0.0
      %427 = vmatpush1.msra.mxu0 0.0
      %428 = vmatprep.subr.mxu0 0.0
      %429 = vmatpush1.msra.mxu0 0.0
      %430 = vmatprep.subr.mxu0 0.0
      %431 = vmatpush1.msra.mxu0 0.0
      %432 = vmatprep.subr.mxu0 0.0
      %433 = vmatpush1.msra.mxu0 0.0
      %434 = vmatprep.mubr.f32.mxu0 0.0
      %v435 = vand.u32 %v190, 4294901760
      %v436 = vsub.f32 %v190, %v435
      %437 = vmatmul.mubr.f32.gmra.mrb[0].mxu0 %v436
      %v438 = vpop.f32.mrb[0].mxu0
      %v439 = vadd.f32 %v359, %v438
      %v440 = vpop.f32.mrb[0].mxu0
      %441 = vdwg.mxu0
      %442 = vmatprep.subr.mxu0 0.0
      %v443 = vand.u32 %v122, 4294901760
      %444 = vmatpush1.msra.mxu0 %v443
      %445 = vmatprep.subr.mxu0 0.0
      %v446 = vand.u32 %v123, 4294901760
      %447 = vmatpush1.msra.mxu0 %v446
      %448 = vmatprep.subr.mxu0 0.0
      %v449 = vand.u32 %v124, 4294901760
      %450 = vmatpush1.msra.mxu0 %v449
      %451 = vmatprep.subr.mxu0 0.0
      %v452 = vand.u32 %v125, 4294901760
      %453 = vmatpush1.msra.mxu0 %v452
      %454 = vmatprep.subr.mxu0 0.0
      %455 = vmatpush1.msra.mxu0 0.0
      %456 = vmatprep.subr.mxu0 0.0
      %457 = vmatpush1.msra.mxu0 0.0
      %458 = vmatprep.subr.mxu0 0.0
      %459 = vmatpush1.msra.mxu0 0.0
      %460 = vmatprep.subr.mxu0 0.0
      %461 = vmatpush1.msra.mxu0 0.0
      %462 = vmatprep.subr.mxu0 0.0
      %463 = vmatpush1.msra.mxu0 0.0
      %464 = vmatprep.subr.mxu0 0.0
      %465 = vmatpush1.msra.mxu0 0.0
      %466 = vmatprep.subr.mxu0 0.0
      %467 = vmatpush1.msra.mxu0 0.0
      %468 = vmatprep.subr.mxu0 0.0
      %469 = vmatpush1.msra.mxu0 0.0
      %470 = vmatprep.subr.mxu0 0.0
      %471 = vmatpush1.msra.mxu0 0.0
      %472 = vmatprep.subr.mxu0 0.0
      %473 = vmatpush1.msra.mxu0 0.0
      %474 = vmatprep.subr.mxu0 0.0
      %475 = vmatpush1.msra.mxu0 0.0
      %476 = vmatprep.subr.mxu0 0.0
      %477 = vmatpush1.msra.mxu0 0.0
      %478 = vmatprep.subr.mxu0 0.0
      %479 = vmatpush1.msra.mxu0 0.0
      %480 = vmatprep.subr.mxu0 0.0
      %481 = vmatpush1.msra.mxu0 0.0
      %482 = vmatprep.subr.mxu0 0.0
      %483 = vmatpush1.msra.mxu0 0.0
      %484 = vmatprep.subr.mxu0 0.0
      %485 = vmatpush1.msra.mxu0 0.0
      %486 = vmatprep.subr.mxu0 0.0
      %487 = vmatpush1.msra.mxu0 0.0
      %488 = vmatprep.subr.mxu0 0.0
      %489 = vmatpush1.msra.mxu0 0.0
      %490 = vmatprep.subr.mxu0 0.0
      %491 = vmatpush1.msra.mxu0 0.0
      %492 = vmatprep.subr.mxu0 0.0
      %493 = vmatpush1.msra.mxu0 0.0
      %494 = vmatprep.subr.mxu0 0.0
      %495 = vmatpush1.msra.mxu0 0.0
      %496 = vmatprep.subr.mxu0 0.0
      %497 = vmatpush1.msra.mxu0 0.0
      %498 = vmatprep.subr.mxu0 0.0
      %499 = vmatpush1.msra.mxu0 0.0
      %500 = vmatprep.subr.mxu0 0.0
      %501 = vmatpush1.msra.mxu0 0.0
      %502 = vmatprep.subr.mxu0 0.0
      %503 = vmatpush1.msra.mxu0 0.0
      %504 = vmatprep.subr.mxu0 0.0
      %505 = vmatpush1.msra.mxu0 0.0
      %506 = vmatprep.subr.mxu0 0.0
      %507 = vmatpush1.msra.mxu0 0.0
      %508 = vmatprep.subr.mxu0 0.0
      %509 = vmatpush1.msra.mxu0 0.0
      %510 = vmatprep.mubr.f32.mxu0 0.0
      %v511 = vand.u32 %v190, 4294901760
      %v512 = vsub.f32 %v190, %v511
      %v513 = vand.u32 %v512, 4294901760
      %514 = vmatmul.mubr.f32.gmra.mrb[0].mxu0 %v513
      %v515 = vpop.f32.mrb[0].mxu0
      %v516 = vadd.f32 %v439, %v515
      %v517 = vpop.f32.mrb[0].mxu0
      %518 = vdwg.mxu0
      %519 = vmatprep.subr.mxu0 0.0
      %v520 = vand.u32 %v122, 4294901760
      %v521 = vsub.f32 %v122, %v520
      %v522 = vand.u32 %v521, 4294901760
      %523 = vmatpush1.msra.mxu0 %v522
      %524 = vmatprep.subr.mxu0 0.0
      %v525 = vand.u32 %v123, 4294901760
      %v526 = vsub.f32 %v123, %v525
      %v527 = vand.u32 %v526, 4294901760
      %528 = vmatpush1.msra.mxu0 %v527
      %529 = vmatprep.subr.mxu0 0.0
      %v530 = vand.u32 %v124, 4294901760
      %v531 = vsub.f32 %v124, %v530
      %v532 = vand.u32 %v531, 4294901760
      %533 = vmatpush1.msra.mxu0 %v532
      %534 = vmatprep.subr.mxu0 0.0
      %v535 = vand.u32 %v125, 4294901760
      %v536 = vsub.f32 %v125, %v535
      %v537 = vand.u32 %v536, 4294901760
      %538 = vmatpush1.msra.mxu0 %v537
      %539 = vmatprep.subr.mxu0 0.0
      %540 = vmatpush1.msra.mxu0 0.0
      %541 = vmatprep.subr.mxu0 0.0
      %542 = vmatpush1.msra.mxu0 0.0
      %543 = vmatprep.subr.mxu0 0.0
      %544 = vmatpush1.msra.mxu0 0.0
      %545 = vmatprep.subr.mxu0 0.0
      %546 = vmatpush1.msra.mxu0 0.0
      %547 = vmatprep.subr.mxu0 0.0
      %548 = vmatpush1.msra.mxu0 0.0
      %549 = vmatprep.subr.mxu0 0.0
      %550 = vmatpush1.msra.mxu0 0.0
      %551 = vmatprep.subr.mxu0 0.0
      %552 = vmatpush1.msra.mxu0 0.0
      %553 = vmatprep.subr.mxu0 0.0
      %554 = vmatpush1.msra.mxu0 0.0
      %555 = vmatprep.subr.mxu0 0.0
      %556 = vmatpush1.msra.mxu0 0.0
      %557 = vmatprep.subr.mxu0 0.0
      %558 = vmatpush1.msra.mxu0 0.0
      %559 = vmatprep.subr.mxu0 0.0
      %560 = vmatpush1.msra.mxu0 0.0
      %561 = vmatprep.subr.mxu0 0.0
      %562 = vmatpush1.msra.mxu0 0.0
      %563 = vmatprep.subr.mxu0 0.0
      %564 = vmatpush1.msra.mxu0 0.0
      %565 = vmatprep.subr.mxu0 0.0
      %566 = vmatpush1.msra.mxu0 0.0
      %567 = vmatprep.subr.mxu0 0.0
      %568 = vmatpush1.msra.mxu0 0.0
      %569 = vmatprep.subr.mxu0 0.0
      %570 = vmatpush1.msra.mxu0 0.0
      %571 = vmatprep.subr.mxu0 0.0
      %572 = vmatpush1.msra.mxu0 0.0
      %573 = vmatprep.subr.mxu0 0.0
      %574 = vmatpush1.msra.mxu0 0.0
      %575 = vmatprep.subr.mxu0 0.0
      %576 = vmatpush1.msra.mxu0 0.0
      %577 = vmatprep.subr.mxu0 0.0
      %578 = vmatpush1.msra.mxu0 0.0
      %579 = vmatprep.subr.mxu0 0.0
      %580 = vmatpush1.msra.mxu0 0.0
      %581 = vmatprep.subr.mxu0 0.0
      %582 = vmatpush1.msra.mxu0 0.0
      %583 = vmatprep.subr.mxu0 0.0
      %584 = vmatpush1.msra.mxu0 0.0
      %585 = vmatprep.subr.mxu0 0.0
      %586 = vmatpush1.msra.mxu0 0.0
      %587 = vmatprep.subr.mxu0 0.0
      %588 = vmatpush1.msra.mxu0 0.0
      %589 = vmatprep.subr.mxu0 0.0
      %590 = vmatpush1.msra.mxu0 0.0
      %591 = vmatprep.subr.mxu0 0.0
      %592 = vmatpush1.msra.mxu0 0.0
      %593 = vmatprep.subr.mxu0 0.0
      %594 = vmatpush1.msra.mxu0 0.0
      %595 = vmatprep.mubr.f32.mxu0 0.0
      %v596 = vand.u32 %v190, 4294901760
      %597 = vmatmul.mubr.f32.gmra.mrb[0].mxu0 %v596
      %v598 = vpop.f32.mrb[0].mxu0
      %v599 = vadd.f32 %v516, %v598
      %v600 = vpop.f32.mrb[0].mxu0
      %601 = vdwg.mxu0
      %602 = vmatprep.subr.mxu0 0.0
      %v603 = vand.u32 %v122, 4294901760
      %604 = vmatpush1.msra.mxu0 %v603
      %605 = vmatprep.subr.mxu0 0.0
      %v606 = vand.u32 %v123, 4294901760
      %607 = vmatpush1.msra.mxu0 %v606
      %608 = vmatprep.subr.mxu0 0.0
      %v609 = vand.u32 %v124, 4294901760
      %610 = vmatpush1.msra.mxu0 %v609
      %611 = vmatprep.subr.mxu0 0.0
      %v612 = vand.u32 %v125, 4294901760
      %613 = vmatpush1.msra.mxu0 %v612
      %614 = vmatprep.subr.mxu0 0.0
      %615 = vmatpush1.msra.mxu0 0.0
      %616 = vmatprep.subr.mxu0 0.0
      %617 = vmatpush1.msra.mxu0 0.0
      %618 = vmatprep.subr.mxu0 0.0
      %619 = vmatpush1.msra.mxu0 0.0
      %620 = vmatprep.subr.mxu0 0.0
      %621 = vmatpush1.msra.mxu0 0.0
      %622 = vmatprep.subr.mxu0 0.0
      %623 = vmatpush1.msra.mxu0 0.0
      %624 = vmatprep.subr.mxu0 0.0
      %625 = vmatpush1.msra.mxu0 0.0
      %626 = vmatprep.subr.mxu0 0.0
      %627 = vmatpush1.msra.mxu0 0.0
      %628 = vmatprep.subr.mxu0 0.0
      %629 = vmatpush1.msra.mxu0 0.0
      %630 = vmatprep.subr.mxu0 0.0
      %631 = vmatpush1.msra.mxu0 0.0
      %632 = vmatprep.subr.mxu0 0.0
      %633 = vmatpush1.msra.mxu0 0.0
      %634 = vmatprep.subr.mxu0 0.0
      %635 = vmatpush1.msra.mxu0 0.0
      %636 = vmatprep.subr.mxu0 0.0
      %637 = vmatpush1.msra.mxu0 0.0
      %638 = vmatprep.subr.mxu0 0.0
      %639 = vmatpush1.msra.mxu0 0.0
      %640 = vmatprep.subr.mxu0 0.0
      %641 = vmatpush1.msra.mxu0 0.0
      %642 = vmatprep.subr.mxu0 0.0
      %643 = vmatpush1.msra.mxu0 0.0
      %644 = vmatprep.subr.mxu0 0.0
      %645 = vmatpush1.msra.mxu0 0.0
      %646 = vmatprep.subr.mxu0 0.0
      %647 = vmatpush1.msra.mxu0 0.0
      %648 = vmatprep.subr.mxu0 0.0
      %649 = vmatpush1.msra.mxu0 0.0
      %650 = vmatprep.subr.mxu0 0.0
      %651 = vmatpush1.msra.mxu0 0.0
      %652 = vmatprep.subr.mxu0 0.0
      %653 = vmatpush1.msra.mxu0 0.0
      %654 = vmatprep.subr.mxu0 0.0
      %655 = vmatpush1.msra.mxu0 0.0
      %656 = vmatprep.subr.mxu0 0.0
      %657 = vmatpush1.msra.mxu0 0.0
      %658 = vmatprep.subr.mxu0 0.0
      %659 = vmatpush1.msra.mxu0 0.0
      %660 = vmatprep.subr.mxu0 0.0
      %661 = vmatpush1.msra.mxu0 0.0
      %662 = vmatprep.subr.mxu0 0.0
      %663 = vmatpush1.msra.mxu0 0.0
      %664 = vmatprep.subr.mxu0 0.0
      %665 = vmatpush1.msra.mxu0 0.0
      %666 = vmatprep.subr.mxu0 0.0
      %667 = vmatpush1.msra.mxu0 0.0
      %668 = vmatprep.subr.mxu0 0.0
      %669 = vmatpush1.msra.mxu0 0.0
      %670 = vmatprep.mubr.f32.mxu0 0.0
      %v671 = vand.u32 %v190, 4294901760
      %672 = vmatmul.mubr.f32.gmra.mrb[0].mxu0 %v671
      %v673 = vpop.f32.mrb[0].mxu0
      %v674 = vadd.f32 %v599, %v673
      %v675 = vpop.f32.mrb[0].mxu0
      %676 = vdwg.mxu0
      %v677 = vtanh.pop %v674
      %678 = vst [vmem:[#allocation8] sm:$0x3] %v677
    $region29: #{tpu_custom_call.1} parent=1 // pred_fallthru
      _
    // Predicated region
    $region30: #{tpu_custom_call.1} parent=1 // pred_check
      _
    $region31: #{tpu_custom_call.1} parent=1 // pred_check_branch
      %680 = sbr.rel (0) target = $region33
    $region32: #{tpu_custom_call.1} parent=1 // pred_region
      %s682 = ssub.s32 32, 32
      %683 = vsyncadd [#allocation5], %s682
      %s685 = sshll.u32 [#allocation8], 4
      %s686 = int_to_ptr.vmem [resolvable:$true] %s685
      %688 = dma.vmem_to_hbm [thread:$0]  %s686, 32, %s3, [#allocation5]
    $region33: #{tpu_custom_call.1} parent=1 // pred_fallthru
      _
    // Predicated region
    $region34: #{tpu_custom_call.1} parent=1 // pred_check
      _
    $region35: #{tpu_custom_call.1} parent=1 // pred_check_branch
      %690 = sbr.rel (0) target = $region37
    $region36: #{tpu_custom_call.1} parent=1 // pred_region
      %691 = dma.done [#allocation5], 32
    $region37: #{tpu_custom_call.1} parent=1 // pred_fallthru
      _
    %692 = vsyncpa [#allocation4], 1
    %693 = vsyncpa [#allocation7], 1
    %694 = vsyncpa [#allocation5], 1

// kernel: tpu_custom_call.1
$region0: #{tpu_custom_call.1}
  #allocation0 [shape = 'u32[]', space=smem, size = 0x4, offset = 0x4, fixed_abs, tag = 'smem constant byte address 0x4 - core index']
  #allocation1 [shape = 'u32[144,128]{1,0:T(1,128)}', space=vmem, size = 0x12000, scoped, tag = 'internal scratch']
  #allocation2 [shape = 'f32[2,32,128]{2,1,0:T(8,128)}', space=vmem, size = 0x8000, scoped, tag = 'scratch operand']
  %s0 = inlined_call_operand.hbm [shape: f32[2,32,128], index: 0, kind: input, shape index: {}]
  %s1 = inlined_call_operand.hbm [shape: f32[32,128], index: 1, kind: input, shape index: {}]
  %s2 = inlined_call_operand.vmem [shape: f32[1,128], index: 2, kind: input, shape index: {}]
  %s3 = inlined_call_operand.hbm [shape: f32[2,128], index: 3, kind: output, shape index: {}]
  %s4 = sld [smem:[#allocation0]]
  $region38: #{tpu_custom_call.1} parent=0
    _
  %s6 = ssub.s32 1, %s4
  %s7 = scalar_select 0, %s6, %s4
  $region1: #{tpu_custom_call.1} parent=0
    #allocation3 [shape = 'u8[32768]{0}', space=vmem, size = 0x8000, scoped, tag = 'input window, operand 0, single buffered']
    #allocation4 [shape = 's32[1]{0}', space=sflag, size = 0x4, scoped, tag = 'scoped memory for tpu_custom_call.1']
    #allocation5 [shape = 's32[1]{0}', space=sflag, size = 0x4, scoped, tag = 'scoped memory for tpu_custom_call.1']
    #allocation6 [shape = 'u8[16384]{0}', space=vmem, size = 0x4000, scoped, tag = 'input window, operand 1, single buffered']
    #allocation7 [shape = 's32[1]{0}', space=sflag, size = 0x4, scoped, tag = 'scoped memory for tpu_custom_call.1']
    #allocation8 [shape = 'u8[1024]{0}', space=vmem, size = 0x400, scoped, tag = 'output window, operand 0, single buffered']
    %8 = vsyncpa [#allocation4], 0
    %9 = vsyncpa [#allocation7], 0
    %10 = vsyncpa [#allocation5], 0
    // Predicated region
    $region2: #{tpu_custom_call.1} parent=1 // pred_check
      _
    $region3: #{tpu_custom_call.1} parent=1 // pred_check_branch
      %12 = sbr.rel (0) target = $region5
    $region4: #{tpu_custom_call.1} parent=1 // pred_region
      %s14 = ssub.s32 1024, 1024
      %15 = vsyncadd [#allocation4], %s14
      %s16 = sshll.u32 [#allocation3], 4
      %s17 = int_to_ptr.vmem [resolvable:$true] %s16
      %22 = dma.hbm_to_vmem [thread:$0]  %s0, 1024, %s17, [#allocation4], 128, 128, 8
    $region5: #{tpu_custom_call.1} parent=1 // pred_fallthru
      _
    // Predicated region
    $region6: #{tpu_custom_call.1} parent=1 // pred_check
      _
    $region7: #{tpu_custom_call.1} parent=1 // pred_check_branch
      %24 = sbr.rel (0) target = $region9
    $region8: #{tpu_custom_call.1} parent=1 // pred_region
      %s26 = ssub.s32 512, 512
      %27 = vsyncadd [#allocation7], %s26
      %s28 = sshll.u32 [#allocation6], 4
      %s29 = int_to_ptr.vmem [resolvable:$true] %s28
      %34 = dma.hbm_to_vmem [thread:$0]  %s1, 512, %s29, [#allocation7], 128, 128, 8
    $region9: #{tpu_custom_call.1} parent=1 // pred_fallthru
      _
    // Predicated region
    $region10: #{tpu_custom_call.1} parent=1 // pred_check
      _
    $region11: #{tpu_custom_call.1} parent=1 // pred_check_branch
      %36 = sbr.rel (0) target = $region13
    $region12: #{tpu_custom_call.1} parent=1 // pred_region
      _
    $region13: #{tpu_custom_call.1} parent=1 // pred_fallthru
      _
    // Predicated region
    $region14: #{tpu_custom_call.1} parent=1 // pred_check
      _
    $region15: #{tpu_custom_call.1} parent=1 // pred_check_branch
      %38 = sbr.rel (0) target = $region17
    $region16: #{tpu_custom_call.1} parent=1 // pred_region
      %39 = dma.done [#allocation4], 1024
    $region17: #{tpu_custom_call.1} parent=1 // pred_fallthru
      _
    // Predicated region
    $region18: #{tpu_custom_call.1} parent=1 // pred_check
      _
    $region19: #{tpu_custom_call.1} parent=1 // pred_check_branch
      %41 = sbr.rel (0) target = $region21
    $region20: #{tpu_custom_call.1} parent=1 // pred_region
      %42 = dma.done [#allocation7], 512
    $region21: #{tpu_custom_call.1} parent=1 // pred_fallthru
      _
    %p43 = scmp.eq.s32.totalorder 0, 0
    // Predicated region
    $region22: #{tpu_custom_call.1} parent=1 // pred_check
      %p44 = pneg %p43
    $region23: #{tpu_custom_call.1} parent=1 // pred_check_branch
      %46 = sbr.rel (%p44) target = $region25
    $region24: #{tpu_custom_call.1} parent=1 // pred_region
      %47 = vst [vmem:[#allocation2] sm:$0xff] 0.0
      %48 = vst [vmem:[#allocation2 + $0x8] sm:$0xff] 0.0
      %49 = vst [vmem:[#allocation2 + $0x10] sm:$0xff] 0.0
      %50 = vst [vmem:[#allocation2 + $0x18] sm:$0xff] 0.0
      %51 = vst [vmem:[#allocation2 + $0x20] sm:$0xff] 0.0
      %52 = vst [vmem:[#allocation2 + $0x28] sm:$0xff] 0.0
      %53 = vst [vmem:[#allocation2 + $0x30] sm:$0xff] 0.0
      %54 = vst [vmem:[#allocation2 + $0x38] sm:$0xff] 0.0
    $region25: #{tpu_custom_call.1} parent=1 // pred_fallthru
      _
    %v55 = vld [vmem:[#allocation2] sm:$0xff]
    %v56 = vld [vmem:[#allocation2 + $0x8] sm:$0xff]
    %v57 = vld [vmem:[#allocation2 + $0x10] sm:$0xff]
    %v58 = vld [vmem:[#allocation2 + $0x18] sm:$0xff]
    %v59 = vld [vmem:[#allocation2 + $0x20] sm:$0xff]
    %v60 = vld [vmem:[#allocation2 + $0x28] sm:$0xff]
    %v61 = vld [vmem:[#allocation2 + $0x30] sm:$0xff]
    %v62 = vld [vmem:[#allocation2 + $0x38] sm:$0xff]
    %v63 = vld [vmem:[#allocation3] sm:$0xff]
    %v64 = vld [vmem:[#allocation3 + $0x8] sm:$0xff]
    %v65 = vld [vmem:[#allocation3 + $0x10] sm:$0xff]
    %v66 = vld [vmem:[#allocation3 + $0x18] sm:$0xff]
    %v67 = vld [vmem:[#allocation3 + $0x20] sm:$0xff]
    %v68 = vld [vmem:[#allocation3 + $0x28] sm:$0xff]
    %v69 = vld [vmem:[#allocation3 + $0x30] sm:$0xff]
    %v70 = vld [vmem:[#allocation3 + $0x38] sm:$0xff]
    %v71 = vadd.f32 %v55, %v63
    %v72 = vadd.f32 %v56, %v64
    %v73 = vadd.f32 %v57, %v65
    %v74 = vadd.f32 %v58, %v66
    %v75 = vadd.f32 %v59, %v67
    %v76 = vadd.f32 %v60, %v68
    %v77 = vadd.f32 %v61, %v69
    %v78 = vadd.f32 %v62, %v70
    %79 = vst [vmem:[#allocation2] sm:$0xff] %v71
    %80 = vst [vmem:[#allocation2 + $0x8] sm:$0xff] %v72
    %81 = vst [vmem:[#allocation2 + $0x10] sm:$0xff] %v73
    %82 = vst [vmem:[#allocation2 + $0x18] sm:$0xff] %v74
    %83 = vst [vmem:[#allocation2 + $0x20] sm:$0xff] %v75
    %84 = vst [vmem:[#allocation2 + $0x28] sm:$0xff] %v76
    %85 = vst [vmem:[#allocation2 + $0x30] sm:$0xff] %v77
    %86 = vst [vmem:[#allocation2 + $0x38] sm:$0xff] %v78
    // Predicated region
    $region26: #{tpu_custom_call.1} parent=1 // pred_check
      %p87 = pneg %p43
    $region27: #{tpu_custom_call.1} parent=1 // pred_check_branch
      %89 = sbr.rel (%p87) target = $region29
    $region28: #{tpu_custom_call.1} parent=1 // pred_region
      %v90 = vld [vmem:[#allocation2] sm:$0xff]
      %v91 = vld [vmem:[#allocation2 + $0x8] sm:$0xff]
      %v92 = vld [vmem:[#allocation2 + $0x10] sm:$0xff]
      %v93 = vld [vmem:[#allocation2 + $0x18] sm:$0xff]
      %v94 = vld [vmem:[#allocation2 + $0x20] sm:$0xff]
      %v95 = vld [vmem:[#allocation2 + $0x28] sm:$0xff]
      %v96 = vld [vmem:[#allocation2 + $0x30] sm:$0xff]
      %v97 = vld [vmem:[#allocation2 + $0x38] sm:$0xff]
      %98 = vadd.xlane.f32.xlu0 %v90
      %v99 = vpop.xlane.xlu0 %98
      %100 = vadd.xlane.f32.xlu0 %v91
      %v101 = vpop.xlane.xlu0 %100
      %102 = vadd.xlane.f32.xlu0 %v92
      %v103 = vpop.xlane.xlu0 %102
      %104 = vadd.xlane.f32.xlu0 %v93
      %v105 = vpop.xlane.xlu0 %104
      %106 = vadd.xlane.f32.xlu0 %v94
      %v107 = vpop.xlane.xlu0 %106
      %108 = vadd.xlane.f32.xlu0 %v95
      %v109 = vpop.xlane.xlu0 %108
      %110 = vadd.xlane.f32.xlu0 %v96
      %v111 = vpop.xlane.xlu0 %110
      %112 = vadd.xlane.f32.xlu0 %v97
      %v113 = vpop.xlane.xlu0 %112
      %v114 = vmul.f32 %v99, 0.0078125
      %v115 = vmul.f32 %v101, 0.0078125
      %v116 = vmul.f32 %v103, 0.0078125
      %v117 = vmul.f32 %v105, 0.0078125
      %v118 = vmul.f32 %v107, 0.0078125
      %v119 = vmul.f32 %v109, 0.0078125
      %v120 = vmul.f32 %v111, 0.0078125
      %v121 = vmul.f32 %v113, 0.0078125
      %v122 = vld [vmem:[#allocation6] sm:$0xff]
      %v123 = vld [vmem:[#allocation6 + $0x8] sm:$0xff]
      %v124 = vld [vmem:[#allocation6 + $0x10] sm:$0xff]
      %v125 = vld [vmem:[#allocation6 + $0x18] sm:$0xff]
      %v126 = vld [vmem:[%s2] sm:$0x1]
      %v128 = vlaneseq
      %v129 = vshrl.u32 %v128, 7
      %v130 = vsub.s32 0, %v129
      %v131 = vrot.slane %v126, %v130
      %v141 = vlaneseq
      %v142 = vand.u32 %v141, 127
      %v143 = vlaneseq
      %v144 = vshrl.u32 %v143, 7
      %v145 = vsub.s32 %v142, %v144
      %v146 = vrot.slane %v114, %v145
      %v147 = vadd.s32 %v142, 4294967288
      %v148 = vlaneseq
      %v149 = vshrl.u32 %v148, 7
      %v150 = vsub.s32 %v147, %v149
      %v151 = vrot.slane %v115, %v150
      %vm152 = vcmask 130112
      %v153 = vsel %vm152, %v151, %v146
      %v154 = vadd.s32 %v142, 4294967280
      %v155 = vlaneseq
      %v156 = vshrl.u32 %v155, 7
      %v157 = vsub.s32 %v154, %v156
      %v158 = vrot.slane %v116, %v157
      %vm159 = vcmask 195712
      %v160 = vsel %vm159, %v158, %v153
      %v161 = vadd.s32 %v142, 4294967272
      %v162 = vlaneseq
      %v163 = vshrl.u32 %v162, 7
      %v164 = vsub.s32 %v161, %v163
      %v165 = vrot.slane %v117, %v164
      %vm166 = vcmask 261312
      %v167 = vsel %vm166, %v165, %v160
      %v168 = vlaneseq
      %v169 = vshrl.u32 %v168, 7
      %v170 = vsub.s32 %v142, %v169
      %v171 = vrot.slane %v118, %v170
      %v172 = vlaneseq
      %v173 = vshrl.u32 %v172, 7
      %v174 = vsub.s32 %v147, %v173
      %v175 = vrot.slane %v119, %v174
      %v176 = vsel %vm152, %v175, %v171
      %v177 = vlaneseq
      %v178 = vshrl.u32 %v177, 7
      %v179 = vsub.s32 %v154, %v178
      %v180 = vrot.slane %v120, %v179
      %v181 = vsel %vm159, %v180, %v176
      %v182 = vlaneseq
      %v183 = vshrl.u32 %v182, 7
      %v184 = vsub.s32 %v161, %v183
      %v185 = vrot.slane %v121, %v184
      %v186 = vsel %vm166, %v185, %v181
      %vm187 = vcmask 1041409
      %v188 = vsel %vm187, %v186, %v167
      %vm189 = vcmask 261120
      %v190 = vsel %vm189, %v188, 0
      %192 = vmatprep.subr.mxu0 0.0
      %v193 = vand.u32 %v122, 4294901760
      %194 = vmatpush1.msra.mxu0 %v193
      %195 = vmatprep.subr.mxu0 0.0
      %v196 = vand.u32 %v123, 4294901760
      %197 = vmatpush1.msra.mxu0 %v196
      %198 = vmatprep.subr.mxu0 0.0
      %v199 = vand.u32 %v124, 4294901760
      %200 = vmatpush1.msra.mxu0 %v199
      %201 = vmatprep.subr.mxu0 0.0
      %v202 = vand.u32 %v125, 4294901760
      %203 = vmatpush1.msra.mxu0 %v202
      %204 = vmatprep.subr.mxu0 0.0
      %205 = vmatpush1.msra.mxu0 0.0
      %206 = vmatprep.subr.mxu0 0.0
      %207 = vmatpush1.msra.mxu0 0.0
      %208 = vmatprep.subr.mxu0 0.0
      %209 = vmatpush1.msra.mxu0 0.0
      %210 = vmatprep.subr.mxu0 0.0
      %211 = vmatpush1.msra.mxu0 0.0
      %212 = vmatprep.subr.mxu0 0.0
      %213 = vmatpush1.msra.mxu0 0.0
      %214 = vmatprep.subr.mxu0 0.0
      %215 = vmatpush1.msra.mxu0 0.0
      %216 = vmatprep.subr.mxu0 0.0
      %217 = vmatpush1.msra.mxu0 0.0
      %218 = vmatprep.subr.mxu0 0.0
      %219 = vmatpush1.msra.mxu0 0.0
      %220 = vmatprep.subr.mxu0 0.0
      %221 = vmatpush1.msra.mxu0 0.0
      %222 = vmatprep.subr.mxu0 0.0
      %223 = vmatpush1.msra.mxu0 0.0
      %224 = vmatprep.subr.mxu0 0.0
      %225 = vmatpush1.msra.mxu0 0.0
      %226 = vmatprep.subr.mxu0 0.0
      %227 = vmatpush1.msra.mxu0 0.0
      %228 = vmatprep.subr.mxu0 0.0
      %229 = vmatpush1.msra.mxu0 0.0
      %230 = vmatprep.subr.mxu0 0.0
      %231 = vmatpush1.msra.mxu0 0.0
      %232 = vmatprep.subr.mxu0 0.0
      %233 = vmatpush1.msra.mxu0 0.0
      %234 = vmatprep.subr.mxu0 0.0
      %235 = vmatpush1.msra.mxu0 0.0
      %236 = vmatprep.subr.mxu0 0.0
      %237 = vmatpush1.msra.mxu0 0.0
      %238 = vmatprep.subr.mxu0 0.0
      %239 = vmatpush1.msra.mxu0 0.0
      %240 = vmatprep.subr.mxu0 0.0
      %241 = vmatpush1.msra.mxu0 0.0
      %242 = vmatprep.subr.mxu0 0.0
      %243 = vmatpush1.msra.mxu0 0.0
      %244 = vmatprep.subr.mxu0 0.0
      %245 = vmatpush1.msra.mxu0 0.0
      %246 = vmatprep.subr.mxu0 0.0
      %247 = vmatpush1.msra.mxu0 0.0
      %248 = vmatprep.subr.mxu0 0.0
      %249 = vmatpush1.msra.mxu0 0.0
      %250 = vmatprep.subr.mxu0 0.0
      %251 = vmatpush1.msra.mxu0 0.0
      %252 = vmatprep.subr.mxu0 0.0
      %253 = vmatpush1.msra.mxu0 0.0
      %254 = vmatprep.subr.mxu0 0.0
      %255 = vmatpush1.msra.mxu0 0.0
      %256 = vmatprep.subr.mxu0 0.0
      %257 = vmatpush1.msra.mxu0 0.0
      %258 = vmatprep.subr.mxu0 0.0
      %259 = vmatpush1.msra.mxu0 0.0
      %260 = vmatprep.mubr.f32.mxu0 0.0
      %v261 = vand.u32 %v190, 4294901760
      %v262 = vsub.f32 %v190, %v261
      %v263 = vand.u32 %v262, 4294901760
      %v264 = vsub.f32 %v262, %v263
      %v265 = vand.u32 %v264, 4294901760
      %266 = vmatmul.mubr.f32.gmra.mrb[0].mxu0 %v265
      %v267 = vpop.f32.mrb[0].mxu0
      %v268 = vadd.f32 %v131, %v267
      %v269 = vpop.f32.mrb[0].mxu0
      %270 = vdwg.mxu0
      %271 = vmatprep.subr.mxu0 0.0
      %v272 = vand.u32 %v122, 4294901760
      %v273 = vsub.f32 %v122, %v272
      %v274 = vand.u32 %v273, 4294901760
      %v275 = vsub.f32 %v273, %v274
      %v276 = vand.u32 %v275, 4294901760
      %277 = vmatpush1.msra.mxu0 %v276
      %278 = vmatprep.subr.mxu0 0.0
      %v279 = vand.u32 %v123, 4294901760
      %v280 = vsub.f32 %v123, %v279
      %v281 = vand.u32 %v280, 4294901760
      %v282 = vsub.f32 %v280, %v281
      %v283 = vand.u32 %v282, 4294901760
      %284 = vmatpush1.msra.mxu0 %v283
      %285 = vmatprep.subr.mxu0 0.0
      %v286 = vand.u32 %v124, 4294901760
      %v287 = vsub.f32 %v124, %v286
      %v288 = vand.u32 %v287, 4294901760
      %v289 = vsub.f32 %v287, %v288
      %v290 = vand.u32 %v289, 4294901760
      %291 = vmatpush1.msra.mxu0 %v290
      %292 = vmatprep.subr.mxu0 0.0
      %v293 = vand.u32 %v125, 4294901760
      %v294 = vsub.f32 %v125, %v293
      %v295 = vand.u32 %v294, 4294901760
      %v296 = vsub.f32 %v294, %v295
      %v297 = vand.u32 %v296, 4294901760
      %298 = vmatpush1.msra.mxu0 %v297
      %299 = vmatprep.subr.mxu0 0.0
      %300 = vmatpush1.msra.mxu0 0.0
      %301 = vmatprep.subr.mxu0 0.0
      %302 = vmatpush1.msra.mxu0 0.0
      %303 = vmatprep.subr.mxu0 0.0
      %304 = vmatpush1.msra.mxu0 0.0
      %305 = vmatprep.subr.mxu0 0.0
      %306 = vmatpush1.msra.mxu0 0.0
      %307 = vmatprep.subr.mxu0 0.0
      %308 = vmatpush1.msra.mxu0 0.0
      %309 = vmatprep.subr.mxu0 0.0
      %310 = vmatpush1.msra.mxu0 0.0
      %311 = vmatprep.subr.mxu0 0.0
      %312 = vmatpush1.msra.mxu0 0.0
      %313 = vmatprep.subr.mxu0 0.0
      %314 = vmatpush1.msra.mxu0 0.0
      %315 = vmatprep.subr.mxu0 0.0
      %316 = vmatpush1.msra.mxu0 0.0
      %317 = vmatprep.subr.mxu0 0.0
      %318 = vmatpush1.msra.mxu0 0.0
      %319 = vmatprep.subr.mxu0 0.0
      %320 = vmatpush1.msra.mxu0 0.0
      %321 = vmatprep.subr.mxu0 0.0
      %322 = vmatpush1.msra.mxu0 0.0
      %323 = vmatprep.subr.mxu0 0.0
      %324 = vmatpush1.msra.mxu0 0.0
      %325 = vmatprep.subr.mxu0 0.0
      %326 = vmatpush1.msra.mxu0 0.0
      %327 = vmatprep.subr.mxu0 0.0
      %328 = vmatpush1.msra.mxu0 0.0
      %329 = vmatprep.subr.mxu0 0.0
      %330 = vmatpush1.msra.mxu0 0.0
      %331 = vmatprep.subr.mxu0 0.0
      %332 = vmatpush1.msra.mxu0 0.0
      %333 = vmatprep.subr.mxu0 0.0
      %334 = vmatpush1.msra.mxu0 0.0
      %335 = vmatprep.subr.mxu0 0.0
      %336 = vmatpush1.msra.mxu0 0.0
      %337 = vmatprep.subr.mxu0 0.0
      %338 = vmatpush1.msra.mxu0 0.0
      %339 = vmatprep.subr.mxu0 0.0
      %340 = vmatpush1.msra.mxu0 0.0
      %341 = vmatprep.subr.mxu0 0.0
      %342 = vmatpush1.msra.mxu0 0.0
      %343 = vmatprep.subr.mxu0 0.0
      %344 = vmatpush1.msra.mxu0 0.0
      %345 = vmatprep.subr.mxu0 0.0
      %346 = vmatpush1.msra.mxu0 0.0
      %347 = vmatprep.subr.mxu0 0.0
      %348 = vmatpush1.msra.mxu0 0.0
      %349 = vmatprep.subr.mxu0 0.0
      %350 = vmatpush1.msra.mxu0 0.0
      %351 = vmatprep.subr.mxu0 0.0
      %352 = vmatpush1.msra.mxu0 0.0
      %353 = vmatprep.subr.mxu0 0.0
      %354 = vmatpush1.msra.mxu0 0.0
      %355 = vmatprep.mubr.f32.mxu0 0.0
      %v356 = vand.u32 %v190, 4294901760
      %357 = vmatmul.mubr.f32.gmra.mrb[0].mxu0 %v356
      %v358 = vpop.f32.mrb[0].mxu0
      %v359 = vadd.f32 %v268, %v358
      %v360 = vpop.f32.mrb[0].mxu0
      %361 = vdwg.mxu0
      %362 = vmatprep.subr.mxu0 0.0
      %v363 = vand.u32 %v122, 4294901760
      %v364 = vsub.f32 %v122, %v363
      %365 = vmatpush1.msra.mxu0 %v364
      %366 = vmatprep.subr.mxu0 0.0
      %v367 = vand.u32 %v123, 4294901760
      %v368 = vsub.f32 %v123, %v367
      %369 = vmatpush1.msra.mxu0 %v368
      %370 = vmatprep.subr.mxu0 0.0
      %v371 = vand.u32 %v124, 4294901760
      %v372 = vsub.f32 %v124, %v371
      %373 = vmatpush1.msra.mxu0 %v372
      %374 = vmatprep.subr.mxu0 0.0
      %v375 = vand.u32 %v125, 4294901760
      %v376 = vsub.f32 %v125, %v375
      %377 = vmatpush1.msra.mxu0 %v376
      %378 = vmatprep.subr.mxu0 0.0
      %379 = vmatpush1.msra.mxu0 0.0
      %380 = vmatprep.subr.mxu0 0.0
      %381 = vmatpush1.msra.mxu0 0.0
      %382 = vmatprep.subr.mxu0 0.0
      %383 = vmatpush1.msra.mxu0 0.0
      %384 = vmatprep.subr.mxu0 0.0
      %385 = vmatpush1.msra.mxu0 0.0
      %386 = vmatprep.subr.mxu0 0.0
      %387 = vmatpush1.msra.mxu0 0.0
      %388 = vmatprep.subr.mxu0 0.0
      %389 = vmatpush1.msra.mxu0 0.0
      %390 = vmatprep.subr.mxu0 0.0
      %391 = vmatpush1.msra.mxu0 0.0
      %392 = vmatprep.subr.mxu0 0.0
      %393 = vmatpush1.msra.mxu0 0.0
      %394 = vmatprep.subr.mxu0 0.0
      %395 = vmatpush1.msra.mxu0 0.0
      %396 = vmatprep.subr.mxu0 0.0
      %397 = vmatpush1.msra.mxu0 0.0
      %398 = vmatprep.subr.mxu0 0.0
      %399 = vmatpush1.msra.mxu0 0.0
      %400 = vmatprep.subr.mxu0 0.0
      %401 = vmatpush1.msra.mxu0 0.0
      %402 = vmatprep.subr.mxu0 0.0
      %403 = vmatpush1.msra.mxu0 0.0
      %404 = vmatprep.subr.mxu0 0.0
      %405 = vmatpush1.msra.mxu0 0.0
      %406 = vmatprep.subr.mxu0 0.0
      %407 = vmatpush1.msra.mxu0 0.0
      %408 = vmatprep.subr.mxu0 0.0
      %409 = vmatpush1.msra.mxu0 0.0
      %410 = vmatprep.subr.mxu0 0.0
      %411 = vmatpush1.msra.mxu0 0.0
      %412 = vmatprep.subr.mxu0 0.0
      %413 = vmatpush1.msra.mxu0 0.0
      %414 = vmatprep.subr.mxu0 0.0
      %415 = vmatpush1.msra.mxu0 0.0
      %416 = vmatprep.subr.mxu0 0.0
      %417 = vmatpush1.msra.mxu0 0.0
      %418 = vmatprep.subr.mxu0 0.0
      %419 = vmatpush1.msra.mxu0 0.0
      %420 = vmatprep.subr.mxu0 0.0
      %421 = vmatpush1.msra.mxu0 0.0
      %422 = vmatprep.subr.mxu0 0.0
      %423 = vmatpush1.msra.mxu0 0.0
      %424 = vmatprep.subr.mxu0 0.0
      %425 = vmatpush1.msra.mxu0 0.0
      %426 = vmatprep.subr.mxu0 0.0
      %427 = vmatpush1.msra.mxu0 0.0
      %428 = vmatprep.subr.mxu0 0.0
      %429 = vmatpush1.msra.mxu0 0.0
      %430 = vmatprep.subr.mxu0 0.0
      %431 = vmatpush1.msra.mxu0 0.0
      %432 = vmatprep.subr.mxu0 0.0
      %433 = vmatpush1.msra.mxu0 0.0
      %434 = vmatprep.mubr.f32.mxu0 0.0
      %v435 = vand.u32 %v190, 4294901760
      %v436 = vsub.f32 %v190, %v435
      %437 = vmatmul.mubr.f32.gmra.mrb[0].mxu0 %v436
      %v438 = vpop.f32.mrb[0].mxu0
      %v439 = vadd.f32 %v359, %v438
      %v440 = vpop.f32.mrb[0].mxu0
      %441 = vdwg.mxu0
      %442 = vmatprep.subr.mxu0 0.0
      %v443 = vand.u32 %v122, 4294901760
      %444 = vmatpush1.msra.mxu0 %v443
      %445 = vmatprep.subr.mxu0 0.0
      %v446 = vand.u32 %v123, 4294901760
      %447 = vmatpush1.msra.mxu0 %v446
      %448 = vmatprep.subr.mxu0 0.0
      %v449 = vand.u32 %v124, 4294901760
      %450 = vmatpush1.msra.mxu0 %v449
      %451 = vmatprep.subr.mxu0 0.0
      %v452 = vand.u32 %v125, 4294901760
      %453 = vmatpush1.msra.mxu0 %v452
      %454 = vmatprep.subr.mxu0 0.0
      %455 = vmatpush1.msra.mxu0 0.0
      %456 = vmatprep.subr.mxu0 0.0
      %457 = vmatpush1.msra.mxu0 0.0
      %458 = vmatprep.subr.mxu0 0.0
      %459 = vmatpush1.msra.mxu0 0.0
      %460 = vmatprep.subr.mxu0 0.0
      %461 = vmatpush1.msra.mxu0 0.0
      %462 = vmatprep.subr.mxu0 0.0
      %463 = vmatpush1.msra.mxu0 0.0
      %464 = vmatprep.subr.mxu0 0.0
      %465 = vmatpush1.msra.mxu0 0.0
      %466 = vmatprep.subr.mxu0 0.0
      %467 = vmatpush1.msra.mxu0 0.0
      %468 = vmatprep.subr.mxu0 0.0
      %469 = vmatpush1.msra.mxu0 0.0
      %470 = vmatprep.subr.mxu0 0.0
      %471 = vmatpush1.msra.mxu0 0.0
      %472 = vmatprep.subr.mxu0 0.0
      %473 = vmatpush1.msra.mxu0 0.0
      %474 = vmatprep.subr.mxu0 0.0
      %475 = vmatpush1.msra.mxu0 0.0
      %476 = vmatprep.subr.mxu0 0.0
      %477 = vmatpush1.msra.mxu0 0.0
      %478 = vmatprep.subr.mxu0 0.0
      %479 = vmatpush1.msra.mxu0 0.0
      %480 = vmatprep.subr.mxu0 0.0
      %481 = vmatpush1.msra.mxu0 0.0
      %482 = vmatprep.subr.mxu0 0.0
      %483 = vmatpush1.msra.mxu0 0.0
      %484 = vmatprep.subr.mxu0 0.0
      %485 = vmatpush1.msra.mxu0 0.0
      %486 = vmatprep.subr.mxu0 0.0
      %487 = vmatpush1.msra.mxu0 0.0
      %488 = vmatprep.subr.mxu0 0.0
      %489 = vmatpush1.msra.mxu0 0.0
      %490 = vmatprep.subr.mxu0 0.0
      %491 = vmatpush1.msra.mxu0 0.0
      %492 = vmatprep.subr.mxu0 0.0
      %493 = vmatpush1.msra.mxu0 0.0
      %494 = vmatprep.subr.mxu0 0.0
      %495 = vmatpush1.msra.mxu0 0.0
      %496 = vmatprep.subr.mxu0 0.0
      %497 = vmatpush1.msra.mxu0 0.0
      %498 = vmatprep.subr.mxu0 0.0
      %499 = vmatpush1.msra.mxu0 0.0
      %500 = vmatprep.subr.mxu0 0.0
      %501 = vmatpush1.msra.mxu0 0.0
      %502 = vmatprep.subr.mxu0 0.0
      %503 = vmatpush1.msra.mxu0 0.0
      %504 = vmatprep.subr.mxu0 0.0
      %505 = vmatpush1.msra.mxu0 0.0
      %506 = vmatprep.subr.mxu0 0.0
      %507 = vmatpush1.msra.mxu0 0.0
      %508 = vmatprep.subr.mxu0 0.0
      %509 = vmatpush1.msra.mxu0 0.0
      %510 = vmatprep.mubr.f32.mxu0 0.0
      %v511 = vand.u32 %v190, 4294901760
      %v512 = vsub.f32 %v190, %v511
      %v513 = vand.u32 %v512, 4294901760
      %514 = vmatmul.mubr.f32.gmra.mrb[0].mxu0 %v513
      %v515 = vpop.f32.mrb[0].mxu0
      %v516 = vadd.f32 %v439, %v515
      %v517 = vpop.f32.mrb[0].mxu0
      %518 = vdwg.mxu0
      %519 = vmatprep.subr.mxu0 0.0
      %v520 = vand.u32 %v122, 4294901760
      %v521 = vsub.f32 %v122, %v520
      %v522 = vand.u32 %v521, 4294901760
      %523 = vmatpush1.msra.mxu0 %v522
      %524 = vmatprep.subr.mxu0 0.0
      %v525 = vand.u32 %v123, 4294901760
      %v526 = vsub.f32 %v123, %v525
      %v527 = vand.u32 %v526, 4294901760
      %528 = vmatpush1.msra.mxu0 %v527
      %529 = vmatprep.subr.mxu0 0.0
      %v530 = vand.u32 %v124, 4294901760
      %v531 = vsub.f32 %v124, %v530
      %v532 = vand.u32 %v531, 4294901760
      %533 = vmatpush1.msra.mxu0 %v532
      %534 = vmatprep.subr.mxu0 0.0
      %v535 = vand.u32 %v125, 4294901760
      %v536 = vsub.f32 %v125, %v535
      %v537 = vand.u32 %v536, 4294901760
      %538 = vmatpush1.msra.mxu0 %v537
      %539 = vmatprep.subr.mxu0 0.0
      %540 = vmatpush1.msra.mxu0 0.0
      %541 = vmatprep.subr.mxu0 0.0
      %542 = vmatpush1.msra.mxu0 0.0
      %543 = vmatprep.subr.mxu0 0.0
      %544 = vmatpush1.msra.mxu0 0.0
      %545 = vmatprep.subr.mxu0 0.0
      %546 = vmatpush1.msra.mxu0 0.0
      %547 = vmatprep.subr.mxu0 0.0
      %548 = vmatpush1.msra.mxu0 0.0
      %549 = vmatprep.subr.mxu0 0.0
      %550 = vmatpush1.msra.mxu0 0.0
      %551 = vmatprep.subr.mxu0 0.0
      %552 = vmatpush1.msra.mxu0 0.0
      %553 = vmatprep.subr.mxu0 0.0
      %554 = vmatpush1.msra.mxu0 0.0
      %555 = vmatprep.subr.mxu0 0.0
      %556 = vmatpush1.msra.mxu0 0.0
      %557 = vmatprep.subr.mxu0 0.0
      %558 = vmatpush1.msra.mxu0 0.0
      %559 = vmatprep.subr.mxu0 0.0
      %560 = vmatpush1.msra.mxu0 0.0
      %561 = vmatprep.subr.mxu0 0.0
      %562 = vmatpush1.msra.mxu0 0.0
      %563 = vmatprep.subr.mxu0 0.0
      %564 = vmatpush1.msra.mxu0 0.0
      %565 = vmatprep.subr.mxu0 0.0
      %566 = vmatpush1.msra.mxu0 0.0
      %567 = vmatprep.subr.mxu0 0.0
      %568 = vmatpush1.msra.mxu0 0.0
      %569 = vmatprep.subr.mxu0 0.0
      %570 = vmatpush1.msra.mxu0 0.0
      %571 = vmatprep.subr.mxu0 0.0
      %572 = vmatpush1.msra.mxu0 0.0
      %573 = vmatprep.subr.mxu0 0.0
      %574 = vmatpush1.msra.mxu0 0.0
      %575 = vmatprep.subr.mxu0 0.0
      %576 = vmatpush1.msra.mxu0 0.0
      %577 = vmatprep.subr.mxu0 0.0
      %578 = vmatpush1.msra.mxu0 0.0
      %579 = vmatprep.subr.mxu0 0.0
      %580 = vmatpush1.msra.mxu0 0.0
      %581 = vmatprep.subr.mxu0 0.0
      %582 = vmatpush1.msra.mxu0 0.0
      %583 = vmatprep.subr.mxu0 0.0
      %584 = vmatpush1.msra.mxu0 0.0
      %585 = vmatprep.subr.mxu0 0.0
      %586 = vmatpush1.msra.mxu0 0.0
      %587 = vmatprep.subr.mxu0 0.0
      %588 = vmatpush1.msra.mxu0 0.0
      %589 = vmatprep.subr.mxu0 0.0
      %590 = vmatpush1.msra.mxu0 0.0
      %591 = vmatprep.subr.mxu0 0.0
      %592 = vmatpush1.msra.mxu0 0.0
      %593 = vmatprep.subr.mxu0 0.0
      %594 = vmatpush1.msra.mxu0 0.0
      %595 = vmatprep.mubr.f32.mxu0 0.0
      %v596 = vand.u32 %v190, 4294901760
      %597 = vmatmul.mubr.f32.gmra.mrb[0].mxu0 %v596
      %v598 = vpop.f32.mrb[0].mxu0
      %v599 = vadd.f32 %v516, %v598
      %v600 = vpop.f32.mrb[0].mxu0
      %601 = vdwg.mxu0
      %602 = vmatprep.subr.mxu0 0.0
      %v603 = vand.u32 %v122, 4294901760
      %604 = vmatpush1.msra.mxu0 %v603
      %605 = vmatprep.subr.mxu0 0.0
      %v606 = vand.u32 %v123, 4294901760
      %607 = vmatpush1.msra.mxu0 %v606
      %608 = vmatprep.subr.mxu0 0.0
      %v609 = vand.u32 %v124, 4294901760
      %610 = vmatpush1.msra.mxu0 %v609
      %611 = vmatprep.subr.mxu0 0.0
      %v612 = vand.u32 %v125, 4294901760
      %613 = vmatpush1.msra.mxu0 %v612
      %614 = vmatprep.subr.mxu0 0.0
      %615 = vmatpush1.msra.mxu0 0.0
      %616 = vmatprep.subr.mxu0 0.0
      %617 = vmatpush1.msra.mxu0 0.0
      %618 = vmatprep.subr.mxu0 0.0
      %619 = vmatpush1.msra.mxu0 0.0
      %620 = vmatprep.subr.mxu0 0.0
      %621 = vmatpush1.msra.mxu0 0.0
      %622 = vmatprep.subr.mxu0 0.0
      %623 = vmatpush1.msra.mxu0 0.0
      %624 = vmatprep.subr.mxu0 0.0
      %625 = vmatpush1.msra.mxu0 0.0
      %626 = vmatprep.subr.mxu0 0.0
      %627 = vmatpush1.msra.mxu0 0.0
      %628 = vmatprep.subr.mxu0 0.0
      %629 = vmatpush1.msra.mxu0 0.0
      %630 = vmatprep.subr.mxu0 0.0
      %631 = vmatpush1.msra.mxu0 0.0
      %632 = vmatprep.subr.mxu0 0.0
      %633 = vmatpush1.msra.mxu0 0.0
      %634 = vmatprep.subr.mxu0 0.0
      %635 = vmatpush1.msra.mxu0 0.0
      %636 = vmatprep.subr.mxu0 0.0
      %637 = vmatpush1.msra.mxu0 0.0
      %638 = vmatprep.subr.mxu0 0.0
      %639 = vmatpush1.msra.mxu0 0.0
      %640 = vmatprep.subr.mxu0 0.0
      %641 = vmatpush1.msra.mxu0 0.0
      %642 = vmatprep.subr.mxu0 0.0
      %643 = vmatpush1.msra.mxu0 0.0
      %644 = vmatprep.subr.mxu0 0.0
      %645 = vmatpush1.msra.mxu0 0.0
      %646 = vmatprep.subr.mxu0 0.0
      %647 = vmatpush1.msra.mxu0 0.0
      %648 = vmatprep.subr.mxu0 0.0
      %649 = vmatpush1.msra.mxu0 0.0
      %650 = vmatprep.subr.mxu0 0.0
      %651 = vmatpush1.msra.mxu0 0.0
      %652 = vmatprep.subr.mxu0 0.0
      %653 = vmatpush1.msra.mxu0 0.0
      %654 = vmatprep.subr.mxu0 0.0
      %655 = vmatpush1.msra.mxu0 0.0
      %656 = vmatprep.subr.mxu0 0.0
      %657 = vmatpush1.msra.mxu0 0.0
      %658 = vmatprep.subr.mxu0 0.0
      %659 = vmatpush1.msra.mxu0 0.0
      %660 = vmatprep.subr.mxu0 0.0
      %661 = vmatpush1.msra.mxu0 0.0
      %662 = vmatprep.subr.mxu0 0.0
      %663 = vmatpush1.msra.mxu0 0.0
      %664 = vmatprep.subr.mxu0 0.0
      %665 = vmatpush1.msra.mxu0 0.0
      %666 = vmatprep.subr.mxu0 0.0
      %667 = vmatpush1.msra.mxu0 0.0
      %668 = vmatprep.subr.mxu0 0.0
      %669 = vmatpush1.msra.mxu0 0.0
      %670 = vmatprep.mubr.f32.mxu0 0.0
      %v671 = vand.u32 %v190, 4294901760
      %672 = vmatmul.mubr.f32.gmra.mrb[0].mxu0 %v671
      %v673 = vpop.f32.mrb[0].mxu0
      %v674 = vadd.f32 %v599, %v673
      %v675 = vpop.f32.mrb[0].mxu0
      %676 = vdwg.mxu0
      %v677 = vtanh.pop %v674
      %678 = vst [vmem:[#allocation8] sm:$0x3] %v677
    $region29: #{tpu_custom_call.1} parent=1 // pred_fallthru
      _
    // Predicated region
    $region30: #{tpu_custom_call.1} parent=1 // pred_check
      _
    $region31: #{tpu_custom_call.1} parent=1 // pred_check_branch
      %680 = sbr.rel (0) target = $region33
    $region32: #{tpu_custom_call.1} parent=1 // pred_region
      %s682 = ssub.s32 32, 32
      %683 = vsyncadd [#allocation5], %s682
      %s685 = sshll.u32 [#allocation8], 4
      %s686 = int_to_ptr.vmem [resolvable:$true] %s685
      %688 = dma.vmem_to_hbm [thread:$0]  %s686, 32, %s3, [#allocation5]
    $region33: #{tpu_custom_call.1} parent=1 // pred_fallthru
      _
    // Predicated region
    $region34: #{tpu_custom_call.1} parent=1 // pred_check
      _
    $region35: #{tpu_custom_call.1} parent=1 // pred_check_branch
      %690 = sbr.rel (0) target = $region37
    $region36: #{tpu_custom_call.1} parent=1 // pred_region
      %691 = dma.done [#allocation5], 32
    $region37: #{tpu_custom_call.1} parent=1 // pred_fallthru
      _
    %692 = vsyncpa [#allocation4], 1
    %693 = vsyncpa [#allocation7], 1
    %694 = vsyncpa [#allocation5], 1

</llo_original>
